<compile_context>
chip_gen: v7x
topology: tpu7x:2x2x1
jax: 0.10.0
libtpu: 0.0.40
codegen_flags: <defaults>
</compile_context>

<pallas_src>
import functools

import jax
import jax.numpy as jnp
from jax.experimental import pallas as pl
from jax.experimental.pallas import tpu as pltpu

EPS = 1e-5


def _cdiv(a, b):
    return -(-a // b)


# ---------- kernel 1: implicit-GEMM conv (+ per-tile partial batch stats) ----------
def conv_stats_kernel(x_ref, w_ref, *out_refs, KH, KW, stride, dilation,
                      TH, W_out, H_out, C_in, THW, with_stats, fuse_relu,
                      needs_mask, out_dtype):
    # x_ref : (1, H_in_padded, W_pad, C_in) bf16 — full padded image, resident
    # w_ref : (KH*KW*C_in, C_out)           bf16 — resident across the grid
    # y_ref : (1, THW, C_out)               out_dtype
    # psum/psumsq : (1, 1, 1, C_out)        f32 per-(image, tile) partials
    if with_stats:
        y_ref, psum_ref, psumsq_ref = out_refs
    else:
        (y_ref,) = out_refs

    t = pl.program_id(1)
    TH_win = (TH - 1) * stride + dilation * (KH - 1) + 1
    row0 = pl.multiple_of(t * (TH * stride), TH * stride)
    xs = x_ref[0, pl.ds(row0, TH_win), :, :]            # (TH_win, W_pad, C_in) bf16

    # in-VMEM im2col: one (THW, KH*KW*C_in) lhs slab -> ONE MXU contraction.
    taps = []
    for kh in range(KH):                                # unrolled at trace time
        for kw in range(KW):
            h0 = kh * dilation
            w0 = kw * dilation
            if stride == 1:
                patch = xs[h0:h0 + TH, w0:w0 + W_out, :]
            else:
                patch = xs[h0:h0 + (TH - 1) * stride + 1:stride,
                           w0:w0 + (W_out - 1) * stride + 1:stride, :]
            taps.append(patch)                          # (TH, W_out, C_in)
    lhs = jnp.concatenate(taps, axis=-1) if len(taps) > 1 else taps[0]
    lhs = lhs.reshape(THW, KH * KW * C_in)              # (THW, K_total) bf16

    acc = jnp.dot(lhs, w_ref[...],
                  preferred_element_type=jnp.float32)   # (THW, C_out) f32

    if with_stats:
        if needs_mask:
            # last tile may contain padded output rows — exclude from stats
            rows = jax.lax.broadcasted_iota(jnp.int32, (THW, 1), 0) // W_out
            valid = (t * TH + rows) < H_out
            acc_s = jnp.where(valid, acc, 0.0)
        else:
            acc_s = acc
        psum_ref[0, 0] = jnp.sum(acc_s, axis=0, keepdims=True)
        psumsq_ref[0, 0] = jnp.sum(acc_s * acc_s, axis=0, keepdims=True)

    if fuse_relu:                                       # only used when bn=False
        acc = jnp.maximum(acc, 0.0)
    y_ref[0] = acc.astype(out_dtype)


# ---------- kernel 2: folded-affine BN + ReLU ----------
def bn_affine_relu_kernel(y_ref, a_ref, b_ref, o_ref, *, use_relu):
    out = y_ref[...].astype(jnp.float32) * a_ref[...] + b_ref[...]
    if use_relu:
        out = jnp.maximum(out, 0.0)
    o_ref[...] = out


@functools.partial(jax.jit, static_argnames=("stride", "padding", "dilation",
                                             "relu", "bn", "eps"))
def basic_conv(x, weight, gamma, beta, *, stride=1, padding=0, dilation=1,
               relu=True, bn=True, eps=EPS):
    """BasicConv forward. x: [N, C_in, H, W] NCHW; weight: [C_out, C_in, KH, KW]."""
    # TODO(synk): groups > 1 (grouped conv) not implemented; groups=1 assumed.
    N, C_in, H, W = x.shape
    C_out, _, KH, KW = weight.shape
    eff_kh = dilation * (KH - 1) + 1
    eff_kw = dilation * (KW - 1) + 1
    H_out = (H + 2 * padding - eff_kh) // stride + 1
    W_out = (W + 2 * padding - eff_kw) // stride + 1
    HW = H_out * W_out
    W_pad = W + 2 * padding
    K_total = KH * KW * C_in

    # ---- spatial (H_out-row) tiling ----
    THW_TARGET = 2048                                   # output positions per tile
    TH = max(1, min(H_out, max(1, THW_TARGET // max(W_out, 1))))
    while TH < H_out and (TH * W_out) % 16 != 0:        # sublane-friendly bf16 tile
        TH += 1
    if TH >= H_out:
        TH = H_out
    n_ht = _cdiv(H_out, TH)
    H_out_pad = n_ht * TH
    THW = TH * W_out
    HW_pad = H_out_pad * W_out
    needs_mask = H_out_pad > H_out

    # padded-input rows needed to produce H_out_pad output rows
    H_x = (H_out_pad - 1) * stride + eff_kh
    bottom_pad = max(padding, H_x - (H + padding))
    H_in_padded = H + padding + bottom_pad

    # ---- layout prep (pad + transpose + cast fuse into one XLA pass) ----
    x_nhwc = jnp.pad(x.transpose(0, 2, 3, 1),
                     ((0, 0), (padding, bottom_pad), (padding, padding), (0, 0))
                     ).astype(jnp.bfloat16)
    w2 = weight.transpose(2, 3, 1, 0).reshape(K_total, C_out).astype(jnp.bfloat16)

    # ---- VMEM budgets (generation-aware ceiling, v7x = 64 MiB/TC) ----
    try:
        vmem_cap = int(pltpu.get_tpu_info().vmem_capacity_bytes)
    except Exception:
        vmem_cap = 64 << 20
    vmem_ceiling = min(40 << 20, (vmem_cap * 5) // 8)

    y_dtype = jnp.bfloat16 if bn else jnp.float32
    y_bytes = 2 if bn else 4
    x_blk = H_in_padded * W_pad * C_in * 2
    w_blk = K_total * C_out * 2
    y_blk1 = THW * C_out * y_bytes
    tmp_blk = THW * K_total * 2 + THW * C_out * 4       # im2col slab + f32 acc
    k1_need = 2 * x_blk + w_blk + 2 * y_blk1 + tmp_blk + 4 * C_out * 4 * 2
    k1_vmem = int(min(vmem_ceiling, max(8 << 20, 2 * k1_need)))
    k2_need = 2 * (THW * C_out * 2 + THW * C_out * 4) + 4 * C_out * 4
    k2_vmem = int(min(vmem_ceiling, max(8 << 20, 2 * k2_need)))

    # ---- kernel 1: implicit-GEMM conv (+ per-tile partial statistics) ----
    k1 = functools.partial(conv_stats_kernel, KH=KH, KW=KW, stride=stride,
                           dilation=dilation, TH=TH, W_out=W_out, H_out=H_out,
                           C_in=C_in, THW=THW, with_stats=bn,
                           fuse_relu=(relu and not bn), needs_mask=needs_mask,
                           out_dtype=y_dtype)
    y_spec = pl.BlockSpec((1, THW, C_out), lambda n, t: (n, t, 0))
    x_spec = pl.BlockSpec((1, H_in_padded, W_pad, C_in), lambda n, t: (n, 0, 0, 0))
    w_spec = pl.BlockSpec((K_total, C_out), lambda n, t: (0, 0))
    if bn:
        stat_spec = pl.BlockSpec((1, 1, 1, C_out), lambda n, t: (n, t, 0, 0))
        out_shape = (jax.ShapeDtypeStruct((N, HW_pad, C_out), y_dtype),
                     jax.ShapeDtypeStruct((N, n_ht, 1, C_out), jnp.float32),
                     jax.ShapeDtypeStruct((N, n_ht, 1, C_out), jnp.float32))
        out_specs = (y_spec, stat_spec, stat_spec)
    else:
        out_shape = jax.ShapeDtypeStruct((N, HW_pad, C_out), y_dtype)
        out_specs = y_spec

    outs = pl.pallas_call(
        k1,
        out_shape=out_shape,
        grid=(N, n_ht),
        in_specs=[x_spec, w_spec],
        out_specs=out_specs,
        compiler_params=pltpu.CompilerParams(
            dimension_semantics=("parallel", "parallel"),
            vmem_limit_bytes=k1_vmem),
    )(x_nhwc, w2)

    if bn:
        y3, psum, psumsq = outs
        # ---- tiny JAX: reduce partials, fold BN into one scale/shift ----
        count = jnp.float32(N * HW)
        s = jnp.sum(psum, axis=(0, 1, 2))               # (C_out,)
        ss = jnp.sum(psumsq, axis=(0, 1, 2))
        mean = s / count
        var = jnp.maximum(ss / count - mean * mean, 0.0)  # clamp: single-pass variance
        a = gamma.astype(jnp.float32) * jax.lax.rsqrt(var + eps)
        b = beta.astype(jnp.float32) - mean * a
        a3 = a.reshape(1, 1, C_out)
        b3 = b.reshape(1, 1, C_out)

        # ---- kernel 2: y*a + b (+ ReLU), bf16 in -> f32 out ----
        k2 = functools.partial(bn_affine_relu_kernel, use_relu=relu)
        out3 = pl.pallas_call(
            k2,
            out_shape=jax.ShapeDtypeStruct((N, HW_pad, C_out), jnp.float32),
            grid=(N, n_ht),
            in_specs=[pl.BlockSpec((1, THW, C_out), lambda n, t: (n, t, 0)),
                      pl.BlockSpec((1, 1, C_out), lambda n, t: (0, 0, 0)),
                      pl.BlockSpec((1, 1, C_out), lambda n, t: (0, 0, 0))],
            out_specs=pl.BlockSpec((1, THW, C_out), lambda n, t: (n, t, 0)),
            compiler_params=pltpu.CompilerParams(
                dimension_semantics=("parallel", "parallel"),
                vmem_limit_bytes=k2_vmem),
        )(y3, a3, b3)
    else:
        out3 = outs                                     # ReLU (if any) fused in k1

    out = out3[:, :HW, :].reshape(N, H_out, W_out, C_out)
    return out.transpose(0, 3, 1, 2).astype(x.dtype)    # NCHW (module contract)


if __name__ == "__main__":
    # BasicConv(in_planes=4, out_planes=8, kernel_size=3, stride=1, padding=1,
    #           relu=True, bn=True, bias=False)
    N, C_in, H, W = 2, 4, 16, 16
    C_out, KH, KW = 8, 3, 3
    stride, padding = 1, 1

    key = jax.random.PRNGKey(0)
    kx, kw, kg, kb = jax.random.split(key, 4)
    x = jax.random.normal(kx, (N, C_in, H, W), dtype=jnp.float32)
    weight = 0.1 * jax.random.normal(kw, (C_out, C_in, KH, KW), dtype=jnp.float32)
    gamma = 1.0 + 0.1 * jax.random.normal(kg, (C_out,), dtype=jnp.float32)
    beta = 0.1 * jax.random.normal(kb, (C_out,), dtype=jnp.float32)

    out = basic_conv(x, weight, gamma, beta, stride=stride, padding=padding,
                     relu=True, bn=True)
    out = jax.block_until_ready(out)

    # Pure-JAX reference. The kernel feeds bf16 operands to the MXU (f32 accumulate)
    # and stores the conv intermediate in bf16, so the reference uses identically
    # rounded inputs; remaining diff is accumulation order + one bf16 rounding of y.
    x_r = x.astype(jnp.bfloat16).astype(jnp.float32)
    w_r = weight.astype(jnp.bfloat16).astype(jnp.float32)
    ref_conv = jax.lax.conv_general_dilated(
        x_r, w_r, window_strides=(stride, stride),
        padding=((padding, padding), (padding, padding)),
        dimension_numbers=("NCHW", "OIHW", "NCHW"),
        precision=jax.lax.Precision.HIGHEST)
    mean = ref_conv.mean(axis=(0, 2, 3), keepdims=True)
    var = ref_conv.var(axis=(0, 2, 3), keepdims=True)
    ref = (ref_conv - mean) * jax.lax.rsqrt(var + EPS)
    ref = ref * gamma.reshape(1, -1, 1, 1) + beta.reshape(1, -1, 1, 1)
    ref = jnp.maximum(ref, 0.0)

    assert out.shape == (N, C_out, H, W)
    err = jnp.max(jnp.abs(out - ref))
    assert jnp.allclose(out, ref, atol=2e-2, rtol=2e-2), f"max abs err {err}"
    print("KERNEL_OK")
</pallas_src>

<mosaic_0001>
module attributes {stable_mosaic.version = 11 : i64} {
  func.func @conv_stats_kernel(%arg0: i32, %arg1: i32, %arg2: memref<1x18x18x4xbf16, #tpu.memory_space<vmem>>, %arg3: memref<36x8xbf16, #tpu.memory_space<vmem>>, %arg4: memref<1x256x8xbf16, #tpu.memory_space<vmem>>, %arg5: memref<1x1x1x8xf32, #tpu.memory_space<vmem>>, %arg6: memref<1x1x1x8xf32, #tpu.memory_space<vmem>>) attributes {dimension_semantics = [#tpu.dimension_semantics<parallel>, #tpu.dimension_semantics<parallel>], iteration_bounds = array<i64: 2, 1>, scalar_prefetch = 0 : i64, scratch_operands = 0 : i64, tpu.core_type = #tpu.core_type<tc>, window_params = [{transform_indices = @transform_0, window_bounds = array<i64: 1, 18, 18, 4>}, {pipeline_mode = #tpu.pipeline_mode<synchronous>, transform_indices = @transform_1, window_bounds = array<i64: 36, 8>}, {transform_indices = @transform_2, window_bounds = array<i64: 1, 256, 8>}, {transform_indices = @transform_3, window_bounds = array<i64: 1, 1, 1, 8>}, {transform_indices = @transform_4, window_bounds = array<i64: 1, 1, 1, 8>}]} {
    %c16_i32 = arith.constant 16 : i32
    %0 = arith.muli %arg1, %c16_i32 : i32
    %1 = tpu.assume_multiple %0, 16 : i32
    %c0 = arith.constant 0 : index
    %2 = arith.index_cast %1 : i32 to index
    %c0_0 = arith.constant 0 : index
    %c0_1 = arith.constant 0 : index
    %3 = vector.load %arg2[%c0, %2, %c0_0, %c0_1] : memref<1x18x18x4xbf16, #tpu.memory_space<vmem>>, vector<1x18x18x4xbf16>
    %4 = vector.shape_cast %3 : vector<1x18x18x4xbf16> to vector<18x18x4xbf16>
    %5 = vector.extract_strided_slice %4 {offsets = [0, 0, 0], sizes = [16, 16, 4], strides = [1, 1, 1]} : vector<18x18x4xbf16> to vector<16x16x4xbf16>
    %6 = vector.extract_strided_slice %4 {offsets = [0, 1, 0], sizes = [16, 16, 4], strides = [1, 1, 1]} : vector<18x18x4xbf16> to vector<16x16x4xbf16>
    %7 = vector.extract_strided_slice %4 {offsets = [0, 2, 0], sizes = [16, 16, 4], strides = [1, 1, 1]} : vector<18x18x4xbf16> to vector<16x16x4xbf16>
    %8 = vector.extract_strided_slice %4 {offsets = [1, 0, 0], sizes = [16, 16, 4], strides = [1, 1, 1]} : vector<18x18x4xbf16> to vector<16x16x4xbf16>
    %9 = vector.extract_strided_slice %4 {offsets = [1, 1, 0], sizes = [16, 16, 4], strides = [1, 1, 1]} : vector<18x18x4xbf16> to vector<16x16x4xbf16>
    %10 = vector.extract_strided_slice %4 {offsets = [1, 2, 0], sizes = [16, 16, 4], strides = [1, 1, 1]} : vector<18x18x4xbf16> to vector<16x16x4xbf16>
    %11 = vector.extract_strided_slice %4 {offsets = [2, 0, 0], sizes = [16, 16, 4], strides = [1, 1, 1]} : vector<18x18x4xbf16> to vector<16x16x4xbf16>
    %12 = vector.extract_strided_slice %4 {offsets = [2, 1, 0], sizes = [16, 16, 4], strides = [1, 1, 1]} : vector<18x18x4xbf16> to vector<16x16x4xbf16>
    %13 = vector.extract_strided_slice %4 {offsets = [2, 2, 0], sizes = [16, 16, 4], strides = [1, 1, 1]} : vector<18x18x4xbf16> to vector<16x16x4xbf16>
    %14 = tpu.concatenate %5, %6, %7, %8, %9, %10, %11, %12, %13 in 2 : vector<16x16x4xbf16>, vector<16x16x4xbf16>, vector<16x16x4xbf16>, vector<16x16x4xbf16>, vector<16x16x4xbf16>, vector<16x16x4xbf16>, vector<16x16x4xbf16>, vector<16x16x4xbf16>, vector<16x16x4xbf16> -> vector<16x16x36xbf16>
    %15 = vector.shape_cast %14 : vector<16x16x36xbf16> to vector<256x36xbf16>
    %c0_2 = arith.constant 0 : index
    %c0_3 = arith.constant 0 : index
    %16 = vector.load %arg3[%c0_2, %c0_3] : memref<36x8xbf16, #tpu.memory_space<vmem>>, vector<36x8xbf16>
    %cst = arith.constant dense<0.000000e+00> : vector<256x8xf32>
    %17 = tpu.matmul %15, %16, %cst {dimension_numbers = #tpu.dot_dimension_numbers<[1], [0], [0], [1], [0, 0, 1, 1], [], []>} : vector<256x36xbf16>, vector<36x8xbf16>, vector<256x8xf32> -> vector<256x8xf32>
    %cst_4 = arith.constant dense<0.000000e+00> : vector<8xf32>
    %18 = vector.multi_reduction <add>, %17, %cst_4 [0] : vector<256x8xf32> to vector<8xf32>
    %19 = vector.shape_cast %18 : vector<8xf32> to vector<1x8xf32>
    %c0_5 = arith.constant 0 : index
    %c0_6 = arith.constant 0 : index
    %c0_7 = arith.constant 0 : index
    %c0_8 = arith.constant 0 : index
    %20 = vector.load %arg5[%c0_5, %c0_6, %c0_7, %c0_8] : memref<1x1x1x8xf32, #tpu.memory_space<vmem>>, vector<1x1x1x8xf32>
    %21 = vector.shape_cast %20 : vector<1x1x1x8xf32> to vector<1x8xf32>
    %22 = vector.shape_cast %19 : vector<1x8xf32> to vector<1x1x1x8xf32>
    tpu.vector_store %arg5[%c0_5, %c0_6, %c0_7, %c0_8], %22 {strides = array<i32>} : memref<1x1x1x8xf32, #tpu.memory_space<vmem>>, vector<1x1x1x8xf32>,
    %23 = arith.mulf %17, %17 : vector<256x8xf32>
    %cst_9 = arith.constant dense<0.000000e+00> : vector<8xf32>
    %24 = vector.multi_reduction <add>, %23, %cst_9 [0] : vector<256x8xf32> to vector<8xf32>
    %25 = vector.shape_cast %24 : vector<8xf32> to vector<1x8xf32>
    %c0_10 = arith.constant 0 : index
    %c0_11 = arith.constant 0 : index
    %c0_12 = arith.constant 0 : index
    %c0_13 = arith.constant 0 : index
    %26 = vector.load %arg6[%c0_10, %c0_11, %c0_12, %c0_13] : memref<1x1x1x8xf32, #tpu.memory_space<vmem>>, vector<1x1x1x8xf32>
    %27 = vector.shape_cast %26 : vector<1x1x1x8xf32> to vector<1x8xf32>
    %28 = vector.shape_cast %25 : vector<1x8xf32> to vector<1x1x1x8xf32>
    tpu.vector_store %arg6[%c0_10, %c0_11, %c0_12, %c0_13], %28 {strides = array<i32>} : memref<1x1x1x8xf32, #tpu.memory_space<vmem>>, vector<1x1x1x8xf32>,
    %29 = arith.truncf %17 : vector<256x8xf32> to vector<256x8xbf16>
    %c0_14 = arith.constant 0 : index
    %c0_15 = arith.constant 0 : index
    %c0_16 = arith.constant 0 : index
    %30 = vector.load %arg4[%c0_14, %c0_15, %c0_16] : memref<1x256x8xbf16, #tpu.memory_space<vmem>>, vector<1x256x8xbf16>
    %31 = vector.shape_cast %30 : vector<1x256x8xbf16> to vector<256x8xbf16>
    %32 = vector.shape_cast %29 : vector<256x8xbf16> to vector<1x256x8xbf16>
    tpu.vector_store %arg4[%c0_14, %c0_15, %c0_16], %32 {strides = array<i32>} : memref<1x256x8xbf16, #tpu.memory_space<vmem>>, vector<1x256x8xbf16>,
    return
  }
  func.func @transform_0(%arg0: i32, %arg1: i32) -> (i32, i32, i32, i32) {
    %c0_i32 = arith.constant 0 : i32
    %c0_i32_0 = arith.constant 0 : i32
    %c0_i32_1 = arith.constant 0 : i32
    %c0_i32_2 = arith.constant 0 : i32
    return %arg0, %c0_i32, %c0_i32_0, %c0_i32_1 : i32, i32, i32, i32
  }
  func.func @transform_1(%arg0: i32, %arg1: i32) -> (i32, i32) {
    %c0_i32 = arith.constant 0 : i32
    %c0_i32_0 = arith.constant 0 : i32
    %c0_i32_1 = arith.constant 0 : i32
    return %c0_i32, %c0_i32_0 : i32, i32
  }
  func.func @transform_2(%arg0: i32, %arg1: i32) -> (i32, i32, i32) {
    %c0_i32 = arith.constant 0 : i32
    %c0_i32_0 = arith.constant 0 : i32
    return %arg0, %arg1, %c0_i32 : i32, i32, i32
  }
  func.func @transform_3(%arg0: i32, %arg1: i32) -> (i32, i32, i32, i32) {
    %c0_i32 = arith.constant 0 : i32
    %c0_i32_0 = arith.constant 0 : i32
    %c0_i32_1 = arith.constant 0 : i32
    return %arg0, %arg1, %c0_i32, %c0_i32_0 : i32, i32, i32, i32
  }
  func.func @transform_4(%arg0: i32, %arg1: i32) -> (i32, i32, i32, i32) {
    %c0_i32 = arith.constant 0 : i32
    %c0_i32_0 = arith.constant 0 : i32
    %c0_i32_1 = arith.constant 0 : i32
    return %arg0, %arg1, %c0_i32, %c0_i32_0 : i32, i32, i32, i32
  }
}

module attributes {stable_mosaic.version = 11 : i64} {
  func.func @bn_affine_relu_kernel(%arg0: i32, %arg1: i32, %arg2: memref<1x256x8xbf16, #tpu.memory_space<vmem>>, %arg3: memref<1x1x8xf32, #tpu.memory_space<vmem>>, %arg4: memref<1x1x8xf32, #tpu.memory_space<vmem>>, %arg5: memref<1x256x8xf32, #tpu.memory_space<vmem>>) attributes {dimension_semantics = [#tpu.dimension_semantics<parallel>, #tpu.dimension_semantics<parallel>], iteration_bounds = array<i64: 2, 1>, scalar_prefetch = 0 : i64, scratch_operands = 0 : i64, tpu.core_type = #tpu.core_type<tc>, window_params = [{transform_indices = @transform_0, window_bounds = array<i64: 1, 256, 8>}, {pipeline_mode = #tpu.pipeline_mode<synchronous>, transform_indices = @transform_1, window_bounds = array<i64: 1, 1, 8>}, {pipeline_mode = #tpu.pipeline_mode<synchronous>, transform_indices = @transform_2, window_bounds = array<i64: 1, 1, 8>}, {transform_indices = @transform_3, window_bounds = array<i64: 1, 256, 8>}]} {
    %c0 = arith.constant 0 : index
    %c0_0 = arith.constant 0 : index
    %c0_1 = arith.constant 0 : index
    %0 = vector.load %arg2[%c0, %c0_0, %c0_1] : memref<1x256x8xbf16, #tpu.memory_space<vmem>>, vector<1x256x8xbf16>
    %1 = arith.extf %0 : vector<1x256x8xbf16> to vector<1x256x8xf32>
    %c0_2 = arith.constant 0 : index
    %c0_3 = arith.constant 0 : index
    %c0_4 = arith.constant 0 : index
    %2 = vector.load %arg3[%c0_2, %c0_3, %c0_4] : memref<1x1x8xf32, #tpu.memory_space<vmem>>, vector<1x1x8xf32>
    %3 = vector.broadcast %2 : vector<1x1x8xf32> to vector<1x256x8xf32>
    %4 = arith.mulf %1, %3 : vector<1x256x8xf32>
    %c0_5 = arith.constant 0 : index
    %c0_6 = arith.constant 0 : index
    %c0_7 = arith.constant 0 : index
    %5 = vector.load %arg4[%c0_5, %c0_6, %c0_7] : memref<1x1x8xf32, #tpu.memory_space<vmem>>, vector<1x1x8xf32>
    %6 = vector.broadcast %5 : vector<1x1x8xf32> to vector<1x256x8xf32>
    %7 = arith.addf %4, %6 : vector<1x256x8xf32>
    %cst = arith.constant 0.000000e+00 : f32
    %8 = vector.broadcast %cst : f32 to vector<1x256x8xf32>
    %9 = arith.maximumf %7, %8 : vector<1x256x8xf32>
    %c0_8 = arith.constant 0 : index
    %c0_9 = arith.constant 0 : index
    %c0_10 = arith.constant 0 : index
    %10 = vector.load %arg5[%c0_8, %c0_9, %c0_10] : memref<1x256x8xf32, #tpu.memory_space<vmem>>, vector<1x256x8xf32>
    tpu.vector_store %arg5[%c0_8, %c0_9, %c0_10], %9 {strides = array<i32>} : memref<1x256x8xf32, #tpu.memory_space<vmem>>, vector<1x256x8xf32>,
    return
  }
  func.func @transform_0(%arg0: i32, %arg1: i32) -> (i32, i32, i32) {
    %c0_i32 = arith.constant 0 : i32
    %c0_i32_0 = arith.constant 0 : i32
    return %arg0, %arg1, %c0_i32 : i32, i32, i32
  }
  func.func @transform_1(%arg0: i32, %arg1: i32) -> (i32, i32, i32) {
    %c0_i32 = arith.constant 0 : i32
    %c0_i32_0 = arith.constant 0 : i32
    %c0_i32_1 = arith.constant 0 : i32
    %c0_i32_2 = arith.constant 0 : i32
    return %c0_i32, %c0_i32_0, %c0_i32_1 : i32, i32, i32
  }
  func.func @transform_2(%arg0: i32, %arg1: i32) -> (i32, i32, i32) {
    %c0_i32 = arith.constant 0 : i32
    %c0_i32_0 = arith.constant 0 : i32
    %c0_i32_1 = arith.constant 0 : i32
    %c0_i32_2 = arith.constant 0 : i32
    return %c0_i32, %c0_i32_0, %c0_i32_1 : i32, i32, i32
  }
  func.func @transform_3(%arg0: i32, %arg1: i32) -> (i32, i32, i32) {
    %c0_i32 = arith.constant 0 : i32
    %c0_i32_0 = arith.constant 0 : i32
    return %arg0, %arg1, %c0_i32 : i32, i32, i32
  }
}

</mosaic_0001>

<llo_original>
// kernel: basic_conv.3
$region0: #{basic_conv.3}
  #allocation0 [shape = 'u32[]', space=smem, size = 0x4, offset = 0x4, fixed_abs, tag = 'smem constant byte address 0x4 - core index']
  #allocation1 [shape = 'u32[144,128]{1,0:T(1,128)}', space=vmem, size = 0x12000, scoped, tag = 'internal scratch']
  %s0 = inlined_call_operand.vmem [shape: bf16[2,256,8], index: 0, kind: input, shape index: {}]
  %s1 = inlined_call_operand.vmem [shape: f32[1,1,8], index: 1, kind: input, shape index: {}]
  %s2 = inlined_call_operand.vmem [shape: f32[1,1,8], index: 2, kind: input, shape index: {}]
  %s3 = inlined_call_operand.vmem [shape: f32[2,256,8], index: 3, kind: output, shape index: {}]
  %s4 = sld [smem:[#allocation0]]
  $region45: #{basic_conv.3} parent=0
    _
  %s6 = ssub.s32 1, %s4
  %s7 = scalar_select 0, %s6, %s4
  loop: start=0, step=1, limit=4
  $region2: #{basic_conv.3} parent=0 // loop_pre_header
    _
  $region3: #{basic_conv.3} parent=0 // loop_header
    %s9 = sphi 0, %s13
    %p10 = scmp.ge.s32.totalorder %s9, 4
    %s16 = sphi 0, %s28
    %s17 = sphi 0, %s24
    %s18 = sphi 0, %s16
    %s19 = sphi 0, %s17
    %s20 = sphi 0, %s18
    %s21 = sphi 0, %s19
    %s33 = sphi 0, %s35
    %s36 = sphi 0, %s33
    %s37 = sphi 0, %s36
    %s53 = sphi 0, %s37
    %s57 = sphi 0, %s57
    %s59 = sphi 0, %s57
    %s60 = sphi 0, %s59
    %s74 = sphi 0, %s60
    %s78 = sphi 0, %s78
    %s80 = sphi 0, %s78
    %s81 = sphi 0, %s80
    %s95 = sphi 0, %s81
    %s103 = sphi 0, %s105
    %s106 = sphi 0, %s103
    %s107 = sphi 0, %s106
    %s123 = sphi 0, %s107
  $region4: #{basic_conv.3} parent=0 // loop_header_branch
    %12 = sbr.rel (%p10) target = $region8
  $region5: #{basic_conv.3} parent=0 // loop_body
    %s14 = ssub.s32 %s9, 1
    %s15 = ssub.s32 %s9, 2
    %s22 = sadd.s32 1, %s17
    %p23 = scmp.ge.s32.totalorder %s22, 1
    %s24 = scalar_select %p23, 0, %s22
    %s25 = sadd.s32 1, %s16
    %s26 = scalar_select %p23, %s25, %s16
    %p27 = scmp.ge.s32.totalorder %s26, 2
    %s28 = scalar_select %p27, 0, %s26
    %s29 = ssub.s32 %s16, %s28
    %s30 = ssub.s32 %s17, %s24
    %s31 = sor.u32 %s29, %s30
    %p32 = scmp.eq.s32.totalorder %s31, 0
    %s34 = sadd.s32 %s33, 1
    %s35 = scalar_select %p32, %s33, %s34
    %p38 = pneg %p32
    %p39 = scmp.eq.s32.totalorder %s9, 1
    %p40 = por %p38, %p39
    %p41 = scmp.ne.s32.totalorder %s33, %s36
    %p42 = scmp.eq.s32.totalorder %s9, 0
    %p43 = por %p41, %p42
    %p44 = scmp.ne.s32.totalorder %s33, %s36
    %p45 = scmp.eq.s32.totalorder %s14, 1
    %p46 = por %p44, %p45
    %p47 = scmp.ne.s32.totalorder %s36, %s37
    %p48 = scmp.eq.s32.totalorder %s14, 0
    %p49 = por %p47, %p48
    %p50 = scmp.ne.s32.totalorder %s36, %s37
    %p51 = scmp.eq.s32.totalorder %s15, 1
    %p52 = por %p50, %p51
    %p54 = scmp.ne.s32.totalorder %s37, %s53
    %p55 = scmp.eq.s32.totalorder %s15, 0
    %p56 = por %p54, %p55
    %s58 = sadd.s32 %s57, 1
    %p61 = scmp.eq.s32.totalorder %s9, 1
    %p62 = scmp.ne.s32.totalorder %s57, %s59
    %p63 = scmp.eq.s32.totalorder %s9, 0
    %p64 = por %p62, %p63
    %p65 = scmp.ne.s32.totalorder %s57, %s59
    %p66 = scmp.eq.s32.totalorder %s14, 1
    %p67 = por %p65, %p66
    %p68 = scmp.ne.s32.totalorder %s59, %s60
    %p69 = scmp.eq.s32.totalorder %s14, 0
    %p70 = por %p68, %p69
    %p71 = scmp.ne.s32.totalorder %s59, %s60
    %p72 = scmp.eq.s32.totalorder %s15, 1
    %p73 = por %p71, %p72
    %p75 = scmp.ne.s32.totalorder %s60, %s74
    %p76 = scmp.eq.s32.totalorder %s15, 0
    %p77 = por %p75, %p76
    %s79 = sadd.s32 %s78, 1
    %p82 = scmp.eq.s32.totalorder %s9, 1
    %p83 = scmp.ne.s32.totalorder %s78, %s80
    %p84 = scmp.eq.s32.totalorder %s9, 0
    %p85 = por %p83, %p84
    %p86 = scmp.ne.s32.totalorder %s78, %s80
    %p87 = scmp.eq.s32.totalorder %s14, 1
    %p88 = por %p86, %p87
    %p89 = scmp.ne.s32.totalorder %s80, %s81
    %p90 = scmp.eq.s32.totalorder %s14, 0
    %p91 = por %p89, %p90
    %p92 = scmp.ne.s32.totalorder %s80, %s81
    %p93 = scmp.eq.s32.totalorder %s15, 1
    %p94 = por %p92, %p93
    %p96 = scmp.ne.s32.totalorder %s81, %s95
    %p97 = scmp.eq.s32.totalorder %s15, 0
    %p98 = por %p96, %p97
    %s99 = ssub.s32 %s16, %s28
    %s100 = ssub.s32 %s17, %s24
    %s101 = sor.u32 %s99, %s100
    %p102 = scmp.eq.s32.totalorder %s101, 0
    %s104 = sadd.s32 %s103, 1
    %s105 = scalar_select %p102, %s103, %s104
    %p108 = pneg %p102
    %p109 = scmp.eq.s32.totalorder %s9, 1
    %p110 = por %p108, %p109
    %p111 = scmp.ne.s32.totalorder %s103, %s106
    %p112 = scmp.eq.s32.totalorder %s9, 0
    %p113 = por %p111, %p112
    %p114 = scmp.ne.s32.totalorder %s103, %s106
    %p115 = scmp.eq.s32.totalorder %s14, 1
    %p116 = por %p114, %p115
    %p117 = scmp.ne.s32.totalorder %s106, %s107
    %p118 = scmp.eq.s32.totalorder %s14, 0
    %p119 = por %p117, %p118
    %p120 = scmp.ne.s32.totalorder %s106, %s107
    %p121 = scmp.eq.s32.totalorder %s15, 1
    %p122 = por %p120, %p121
    %p124 = scmp.ne.s32.totalorder %s107, %s123
    %p125 = scmp.eq.s32.totalorder %s15, 0
    %p126 = por %p124, %p125
    %p127 = scmp.le.s32.totalorder 1, %s9
    %p128 = scmp.lt.s32.totalorder %s9, 3
    %p129 = pnand %p127, %p128
    %p130 = pneg %p129
    // Predicated region
    $region9: #{basic_conv.3} parent=5 // pred_check
      _
    $region10: #{basic_conv.3} parent=5 // pred_check_branch
      %132 = sbr.rel (%p129) target = $region12
    $region11: #{basic_conv.3} parent=5 // pred_region
      %s133 = ssub.s32 %s9, 1
      // Predicated region
      $region13: #{basic_conv.3} parent=11 // pred_check
        %p134 = pneg %p70
      $region14: #{basic_conv.3} parent=11 // pred_check_branch
        %136 = sbr.rel (%p134) target = $region16
      $region15: #{basic_conv.3} parent=11 // pred_region
        _
      $region16: #{basic_conv.3} parent=11 // pred_fallthru
        _
      // Predicated region
      $region17: #{basic_conv.3} parent=11 // pred_check
        %p137 = pneg %p91
      $region18: #{basic_conv.3} parent=11 // pred_check_branch
        %139 = sbr.rel (%p137) target = $region20
      $region19: #{basic_conv.3} parent=11 // pred_region
        _
      $region20: #{basic_conv.3} parent=11 // pred_fallthru
        _
    $region12: #{basic_conv.3} parent=5 // pred_fallthru
      _
    %p140 = scmp.lt.s32.totalorder %s9, 2
    // Predicated region
    $region21: #{basic_conv.3} parent=5 // pred_check
      %p141 = pneg %p140
    $region22: #{basic_conv.3} parent=5 // pred_check_branch
      %143 = sbr.rel (%p141) target = $region24
    $region23: #{basic_conv.3} parent=5 // pred_region
      // Predicated region
      $region25: #{basic_conv.3} parent=23 // pred_check
        %p144 = pneg %p43
      $region26: #{basic_conv.3} parent=23 // pred_check_branch
        %146 = sbr.rel (%p144) target = $region28
      $region27: #{basic_conv.3} parent=23 // pred_region
        %s147 = smul.u32 32, %s17
        %p148 = scmp.lt.s32.totalorder %s16, 1
        %s149 = scalar_select %p148, %s16, 1
        %p150 = scmp.lt.s32.totalorder %s147, 31
        %s151 = scalar_select %p150, %s147, 31
        %s152 = smul.addr %s149, 32
        %s153 = sadd.s32 %s151, %s152
        %s154 = smul.addr %s153, 4
        %s155 = scalar_lea.vmem %s0, %s154
        %s156 = smul.u32 32, %s17
      $region28: #{basic_conv.3} parent=23 // pred_fallthru
        _
    $region24: #{basic_conv.3} parent=5 // pred_fallthru
      _
    %p157 = scmp.le.s32.totalorder 1, %s9
    %p158 = scmp.lt.s32.totalorder %s9, 3
    %p159 = pnand %p157, %p158
    %p160 = pneg %p159
    // Predicated region
    $region29: #{basic_conv.3} parent=5 // pred_check
      _
    $region30: #{basic_conv.3} parent=5 // pred_check_branch
      %162 = sbr.rel (%p159) target = $region32
    $region31: #{basic_conv.3} parent=5 // pred_region
      %s163 = ssub.s32 %s9, 1
      %s164 = smul.u32 32, %s19
      %p165 = scmp.lt.s32.totalorder %s18, 1
      %s166 = scalar_select %p165, %s18, 1
      %p167 = scmp.lt.s32.totalorder %s164, 31
      %s168 = scalar_select %p167, %s164, 31
      %s169 = smul.addr %s166, 32
      %s170 = sadd.s32 %s168, %s169
      %s171 = smul.addr %s170, 4
      %s172 = scalar_lea.vmem %s0, %s171
      %p173 = pneg %p49
      %p174 = pneg %p46
      %p175 = pneg %p70
      %p176 = pneg %p67
      %p177 = pneg %p91
      %p178 = pneg %p88
      %p179 = pneg %p119
      %p180 = pneg %p116
      %s181 = smul.u32 32, %s19
      %p182 = scmp.lt.s32.totalorder %s18, 1
      %s183 = scalar_select %p182, %s18, 1
      %p184 = scmp.lt.s32.totalorder %s181, 31
      %s185 = scalar_select %p184, %s181, 31
      %s186 = smul.addr %s183, 32
      %s187 = sadd.s32 %s185, %s186
      %s188 = smul.addr %s187, 8
      %s189 = scalar_lea.vmem %s3, %s188
      %s190 = smul.u32 32, %s19
      %p191 = scmp.lt.s32.totalorder %s18, 1
      %s192 = scalar_select %p191, %s18, 1
      %p193 = scmp.lt.s32.totalorder %s190, 31
      %s194 = scalar_select %p193, %s190, 31
      %s195 = smul.addr %s192, 32
      %s196 = sadd.s32 %s194, %s195
      %s197 = smul.addr %s196, 4
      %s198 = scalar_lea.vmem %s0, %s197
      %s199 = smul.u32 32, %s19
      %s200 = smul.u32 32, %s19
      %p201 = scmp.lt.s32.totalorder %s18, 1
      %s202 = scalar_select %p201, %s18, 1
      %p203 = scmp.lt.s32.totalorder %s200, 31
      %s204 = scalar_select %p203, %s200, 31
      %s205 = smul.addr %s202, 32
      %s206 = sadd.s32 %s204, %s205
      %s207 = smul.addr %s206, 8
      %s208 = scalar_lea.vmem %s3, %s207
      %s209 = smul.u32 32, %s19
      %v210 = vld [vmem:[%s198] sm:$0xf]
      %v211 = vld [vmem:[%s198 + $0x4] sm:$0xf]
      %v212 = vld [vmem:[%s198 + $0x8] sm:$0xf]
      %v213 = vld [vmem:[%s198 + $0xc] sm:$0xf]
      %v214 = vld [vmem:[%s198 + $0x10] sm:$0xf]
      %v215 = vld [vmem:[%s198 + $0x14] sm:$0xf]
      %v216 = vld [vmem:[%s198 + $0x18] sm:$0xf]
      %v217 = vld [vmem:[%s198 + $0x1c] sm:$0xf]
      %v218 = vld [vmem:[%s198 + $0x20] sm:$0xf]
      %v219 = vld [vmem:[%s198 + $0x24] sm:$0xf]
      %v220 = vld [vmem:[%s198 + $0x28] sm:$0xf]
      %v221 = vld [vmem:[%s198 + $0x2c] sm:$0xf]
      %v222 = vld [vmem:[%s198 + $0x30] sm:$0xf]
      %v223 = vld [vmem:[%s198 + $0x34] sm:$0xf]
      %v224 = vld [vmem:[%s198 + $0x38] sm:$0xf]
      %v225 = vld [vmem:[%s198 + $0x3c] sm:$0xf]
      %v226 = vld [vmem:[%s198 + $0x40] sm:$0xf]
      %v227 = vld [vmem:[%s198 + $0x44] sm:$0xf]
      %v228 = vld [vmem:[%s198 + $0x48] sm:$0xf]
      %v229 = vld [vmem:[%s198 + $0x4c] sm:$0xf]
      %v230 = vld [vmem:[%s198 + $0x50] sm:$0xf]
      %v231 = vld [vmem:[%s198 + $0x54] sm:$0xf]
      %v232 = vld [vmem:[%s198 + $0x58] sm:$0xf]
      %v233 = vld [vmem:[%s198 + $0x5c] sm:$0xf]
      %v234 = vld [vmem:[%s198 + $0x60] sm:$0xf]
      %v235 = vld [vmem:[%s198 + $0x64] sm:$0xf]
      %v236 = vld [vmem:[%s198 + $0x68] sm:$0xf]
      %v237 = vld [vmem:[%s198 + $0x6c] sm:$0xf]
      %v238 = vld [vmem:[%s198 + $0x70] sm:$0xf]
      %v239 = vld [vmem:[%s198 + $0x74] sm:$0xf]
      %v240 = vld [vmem:[%s198 + $0x78] sm:$0xf]
      %v241 = vld [vmem:[%s198 + $0x7c] sm:$0xf]
      %v242 = vunpack.c.l.bf16 %v210
      %v243 = vunpack.c.l.bf16 %v211
      %v244 = vunpack.c.l.bf16 %v212
      %v245 = vunpack.c.l.bf16 %v213
      %v246 = vunpack.c.l.bf16 %v214
      %v247 = vunpack.c.l.bf16 %v215
      %v248 = vunpack.c.l.bf16 %v216
      %v249 = vunpack.c.l.bf16 %v217
      %v250 = vunpack.c.l.bf16 %v218
      %v251 = vunpack.c.l.bf16 %v219
      %v252 = vunpack.c.l.bf16 %v220
      %v253 = vunpack.c.l.bf16 %v221
      %v254 = vunpack.c.l.bf16 %v222
      %v255 = vunpack.c.l.bf16 %v223
      %v256 = vunpack.c.l.bf16 %v224
      %v257 = vunpack.c.l.bf16 %v225
      %v258 = vunpack.c.l.bf16 %v226
      %v259 = vunpack.c.l.bf16 %v227
      %v260 = vunpack.c.l.bf16 %v228
      %v261 = vunpack.c.l.bf16 %v229
      %v262 = vunpack.c.l.bf16 %v230
      %v263 = vunpack.c.l.bf16 %v231
      %v264 = vunpack.c.l.bf16 %v232
      %v265 = vunpack.c.l.bf16 %v233
      %v266 = vunpack.c.l.bf16 %v234
      %v267 = vunpack.c.l.bf16 %v235
      %v268 = vunpack.c.l.bf16 %v236
      %v269 = vunpack.c.l.bf16 %v237
      %v270 = vunpack.c.l.bf16 %v238
      %v271 = vunpack.c.l.bf16 %v239
      %v272 = vunpack.c.l.bf16 %v240
      %v273 = vunpack.c.l.bf16 %v241
      %v274 = vld [vmem:[%s1] sm:$0x1]
      %v276 = vlaneseq
      %v277 = vshrl.u32 %v276, 7
      %v278 = vsub.s32 0, %v277
      %v279 = vrot.slane %v274, %v278
      %v281 = vmul.f32 %v242, %v279
      %v282 = vmul.f32 %v243, %v279
      %v283 = vmul.f32 %v244, %v279
      %v284 = vmul.f32 %v245, %v279
      %v285 = vmul.f32 %v246, %v279
      %v286 = vmul.f32 %v247, %v279
      %v287 = vmul.f32 %v248, %v279
      %v288 = vmul.f32 %v249, %v279
      %v289 = vmul.f32 %v250, %v279
      %v290 = vmul.f32 %v251, %v279
      %v291 = vmul.f32 %v252, %v279
      %v292 = vmul.f32 %v253, %v279
      %v293 = vmul.f32 %v254, %v279
      %v294 = vmul.f32 %v255, %v279
      %v295 = vmul.f32 %v256, %v279
      %v296 = vmul.f32 %v257, %v279
      %v297 = vmul.f32 %v258, %v279
      %v298 = vmul.f32 %v259, %v279
      %v299 = vmul.f32 %v260, %v279
      %v300 = vmul.f32 %v261, %v279
      %v301 = vmul.f32 %v262, %v279
      %v302 = vmul.f32 %v263, %v279
      %v303 = vmul.f32 %v264, %v279
      %v304 = vmul.f32 %v265, %v279
      %v305 = vmul.f32 %v266, %v279
      %v306 = vmul.f32 %v267, %v279
      %v307 = vmul.f32 %v268, %v279
      %v308 = vmul.f32 %v269, %v279
      %v309 = vmul.f32 %v270, %v279
      %v310 = vmul.f32 %v271, %v279
      %v311 = vmul.f32 %v272, %v279
      %v312 = vmul.f32 %v273, %v279
      %v313 = vld [vmem:[%s2] sm:$0x1]
      %v315 = vlaneseq
      %v316 = vshrl.u32 %v315, 7
      %v317 = vsub.s32 0, %v316
      %v318 = vrot.slane %v313, %v317
      %v320 = vadd.f32 %v281, %v318
      %v321 = vadd.f32 %v282, %v318
      %v322 = vadd.f32 %v283, %v318
      %v323 = vadd.f32 %v284, %v318
      %v324 = vadd.f32 %v285, %v318
      %v325 = vadd.f32 %v286, %v318
      %v326 = vadd.f32 %v287, %v318
      %v327 = vadd.f32 %v288, %v318
      %v328 = vadd.f32 %v289, %v318
      %v329 = vadd.f32 %v290, %v318
      %v330 = vadd.f32 %v291, %v318
      %v331 = vadd.f32 %v292, %v318
      %v332 = vadd.f32 %v293, %v318
      %v333 = vadd.f32 %v294, %v318
      %v334 = vadd.f32 %v295, %v318
      %v335 = vadd.f32 %v296, %v318
      %v336 = vadd.f32 %v297, %v318
      %v337 = vadd.f32 %v298, %v318
      %v338 = vadd.f32 %v299, %v318
      %v339 = vadd.f32 %v300, %v318
      %v340 = vadd.f32 %v301, %v318
      %v341 = vadd.f32 %v302, %v318
      %v342 = vadd.f32 %v303, %v318
      %v343 = vadd.f32 %v304, %v318
      %v344 = vadd.f32 %v305, %v318
      %v345 = vadd.f32 %v306, %v318
      %v346 = vadd.f32 %v307, %v318
      %v347 = vadd.f32 %v308, %v318
      %v348 = vadd.f32 %v309, %v318
      %v349 = vadd.f32 %v310, %v318
      %v350 = vadd.f32 %v311, %v318
      %v351 = vadd.f32 %v312, %v318
      %v352 = vmax.f32 %v320, 0.0
      %v353 = vmax.f32 %v321, 0.0
      %v354 = vmax.f32 %v322, 0.0
      %v355 = vmax.f32 %v323, 0.0
      %v356 = vmax.f32 %v324, 0.0
      %v357 = vmax.f32 %v325, 0.0
      %v358 = vmax.f32 %v326, 0.0
      %v359 = vmax.f32 %v327, 0.0
      %v360 = vmax.f32 %v328, 0.0
      %v361 = vmax.f32 %v329, 0.0
      %v362 = vmax.f32 %v330, 0.0
      %v363 = vmax.f32 %v331, 0.0
      %v364 = vmax.f32 %v332, 0.0
      %v365 = vmax.f32 %v333, 0.0
      %v366 = vmax.f32 %v334, 0.0
      %v367 = vmax.f32 %v335, 0.0
      %v368 = vmax.f32 %v336, 0.0
      %v369 = vmax.f32 %v337, 0.0
      %v370 = vmax.f32 %v338, 0.0
      %v371 = vmax.f32 %v339, 0.0
      %v372 = vmax.f32 %v340, 0.0
      %v373 = vmax.f32 %v341, 0.0
      %v374 = vmax.f32 %v342, 0.0
      %v375 = vmax.f32 %v343, 0.0
      %v376 = vmax.f32 %v344, 0.0
      %v377 = vmax.f32 %v345, 0.0
      %v378 = vmax.f32 %v346, 0.0
      %v379 = vmax.f32 %v347, 0.0
      %v380 = vmax.f32 %v348, 0.0
      %v381 = vmax.f32 %v349, 0.0
      %v382 = vmax.f32 %v350, 0.0
      %v383 = vmax.f32 %v351, 0.0
      %vm384 = vcmask 64512
      %385 = vst.msk [vmem:[%s208] sm:$0xff] %vm384, %v352
      %386 = vst.msk [vmem:[%s208 + $0x8] sm:$0xff] %vm384, %v353
      %387 = vst.msk [vmem:[%s208 + $0x10] sm:$0xff] %vm384, %v354
      %388 = vst.msk [vmem:[%s208 + $0x18] sm:$0xff] %vm384, %v355
      %389 = vst.msk [vmem:[%s208 + $0x20] sm:$0xff] %vm384, %v356
      %390 = vst.msk [vmem:[%s208 + $0x28] sm:$0xff] %vm384, %v357
      %391 = vst.msk [vmem:[%s208 + $0x30] sm:$0xff] %vm384, %v358
      %392 = vst.msk [vmem:[%s208 + $0x38] sm:$0xff] %vm384, %v359
      %393 = vst.msk [vmem:[%s208 + $0x40] sm:$0xff] %vm384, %v360
      %394 = vst.msk [vmem:[%s208 + $0x48] sm:$0xff] %vm384, %v361
      %395 = vst.msk [vmem:[%s208 + $0x50] sm:$0xff] %vm384, %v362
      %396 = vst.msk [vmem:[%s208 + $0x58] sm:$0xff] %vm384, %v363
      %397 = vst.msk [vmem:[%s208 + $0x60] sm:$0xff] %vm384, %v364
      %398 = vst.msk [vmem:[%s208 + $0x68] sm:$0xff] %vm384, %v365
      %399 = vst.msk [vmem:[%s208 + $0x70] sm:$0xff] %vm384, %v366
      %400 = vst.msk [vmem:[%s208 + $0x78] sm:$0xff] %vm384, %v367
      %401 = vst.msk [vmem:[%s208 + $0x80] sm:$0xff] %vm384, %v368
      %402 = vst.msk [vmem:[%s208 + $0x88] sm:$0xff] %vm384, %v369
      %403 = vst.msk [vmem:[%s208 + $0x90] sm:$0xff] %vm384, %v370
      %404 = vst.msk [vmem:[%s208 + $0x98] sm:$0xff] %vm384, %v371
      %405 = vst.msk [vmem:[%s208 + $0xa0] sm:$0xff] %vm384, %v372
      %406 = vst.msk [vmem:[%s208 + $0xa8] sm:$0xff] %vm384, %v373
      %407 = vst.msk [vmem:[%s208 + $0xb0] sm:$0xff] %vm384, %v374
      %408 = vst.msk [vmem:[%s208 + $0xb8] sm:$0xff] %vm384, %v375
      %409 = vst.msk [vmem:[%s208 + $0xc0] sm:$0xff] %vm384, %v376
      %410 = vst.msk [vmem:[%s208 + $0xc8] sm:$0xff] %vm384, %v377
      %411 = vst.msk [vmem:[%s208 + $0xd0] sm:$0xff] %vm384, %v378
      %412 = vst.msk [vmem:[%s208 + $0xd8] sm:$0xff] %vm384, %v379
      %413 = vst.msk [vmem:[%s208 + $0xe0] sm:$0xff] %vm384, %v380
      %414 = vst.msk [vmem:[%s208 + $0xe8] sm:$0xff] %vm384, %v381
      %415 = vst.msk [vmem:[%s208 + $0xf0] sm:$0xff] %vm384, %v382
      %416 = vst.msk [vmem:[%s208 + $0xf8] sm:$0xff] %vm384, %v383
      %s417 = smul.u32 32, %s19
      %p418 = scmp.lt.s32.totalorder %s18, 1
      %s419 = scalar_select %p418, %s18, 1
      %p420 = scmp.lt.s32.totalorder %s417, 31
      %s421 = scalar_select %p420, %s417, 31
      %s422 = smul.addr %s419, 32
      %s423 = sadd.s32 %s421, %s422
      %s424 = smul.addr %s423, 8
      %s425 = scalar_lea.vmem %s3, %s424
      // Predicated region
      $region33: #{basic_conv.3} parent=31 // pred_check
        %p426 = pneg %p116
      $region34: #{basic_conv.3} parent=31 // pred_check_branch
        %428 = sbr.rel (%p426) target = $region36
      $region35: #{basic_conv.3} parent=31 // pred_region
        %s429 = smul.u32 32, %s19
      $region36: #{basic_conv.3} parent=31 // pred_fallthru
        _
    $region32: #{basic_conv.3} parent=5 // pred_fallthru
      _
    %p430 = scmp.le.s32.totalorder 2, %s9
    // Predicated region
    $region37: #{basic_conv.3} parent=5 // pred_check
      %p431 = pneg %p430
    $region38: #{basic_conv.3} parent=5 // pred_check_branch
      %433 = sbr.rel (%p431) target = $region40
    $region39: #{basic_conv.3} parent=5 // pred_region
      %s434 = ssub.s32 %s9, 2
      // Predicated region
      $region41: #{basic_conv.3} parent=39 // pred_check
        %p435 = pneg %p122
      $region42: #{basic_conv.3} parent=39 // pred_check_branch
        %437 = sbr.rel (%p435) target = $region44
      $region43: #{basic_conv.3} parent=39 // pred_region
        %s438 = smul.u32 32, %s21
        %p439 = scmp.lt.s32.totalorder %s20, 1
        %s440 = scalar_select %p439, %s20, 1
        %p441 = scmp.lt.s32.totalorder %s438, 31
        %s442 = scalar_select %p441, %s438, 31
        %s443 = smul.addr %s440, 32
        %s444 = sadd.s32 %s442, %s443
        %s445 = smul.addr %s444, 8
        %s446 = scalar_lea.vmem %s3, %s445
      $region44: #{basic_conv.3} parent=39 // pred_fallthru
        _
    $region40: #{basic_conv.3} parent=5 // pred_fallthru
      _
  $region6: #{basic_conv.3} parent=0 // loop_footer
    %s13 = sadd.s32 1, %s9
  $region7: #{basic_conv.3} parent=0 // loop_footer_branch
    %8 = sbr.rel target = $region3
  $region8: #{basic_conv.3} parent=0 // loop_exit
    _

// kernel: basic_conv.2
$region0: #{basic_conv.2}
  #allocation0 [shape = 'u32[]', space=smem, size = 0x4, offset = 0x4, fixed_abs, tag = 'smem constant byte address 0x4 - core index']
  #allocation1 [shape = 'u32[144,128]{1,0:T(1,128)}', space=vmem, size = 0x12000, scoped, tag = 'internal scratch']
  %s0 = inlined_call_operand.vmem [shape: bf16[2,18,18,4], index: 0, kind: input, shape index: {}]
  %s1 = inlined_call_operand.vmem [shape: bf16[36,8], index: 1, kind: input, shape index: {}]
  %s2 = inlined_call_operand.vmem [shape: bf16[2,256,8], index: 2, kind: output, shape index: {0}]
  %s3 = inlined_call_operand.vmem [shape: f32[2,1,1,8], index: 3, kind: output, shape index: {1}]
  %s4 = inlined_call_operand.vmem [shape: f32[2,1,1,8], index: 4, kind: output, shape index: {2}]
  %5 = xla_tuple %s2, %s3, %s4
  %s6 = sld [smem:[#allocation0]]
  $region57: #{basic_conv.2} parent=0
    _
  %s8 = ssub.s32 1, %s6
  %s9 = scalar_select 0, %s8, %s6
  loop: start=0, step=1, limit=4
  $region2: #{basic_conv.2} parent=0 // loop_pre_header
    _
  $region3: #{basic_conv.2} parent=0 // loop_header
    %s11 = sphi 0, %s15
    %p12 = scmp.ge.s32.totalorder %s11, 4
    %s18 = sphi 0, %s30
    %s19 = sphi 0, %s26
    %s20 = sphi 0, %s18
    %s21 = sphi 0, %s19
    %s22 = sphi 0, %s20
    %s23 = sphi 0, %s21
    %s33 = sphi 0, %s35
    %s36 = sphi 0, %s33
    %s37 = sphi 0, %s36
    %s53 = sphi 0, %s37
    %s57 = sphi 0, %s57
    %s59 = sphi 0, %s57
    %s60 = sphi 0, %s59
    %s74 = sphi 0, %s60
    %s82 = sphi 0, %s84
    %s85 = sphi 0, %s82
    %s86 = sphi 0, %s85
    %s102 = sphi 0, %s86
    %s110 = sphi 0, %s112
    %s113 = sphi 0, %s110
    %s114 = sphi 0, %s113
    %s130 = sphi 0, %s114
    %s138 = sphi 0, %s140
    %s141 = sphi 0, %s138
    %s142 = sphi 0, %s141
    %s158 = sphi 0, %s142
  $region4: #{basic_conv.2} parent=0 // loop_header_branch
    %14 = sbr.rel (%p12) target = $region8
  $region5: #{basic_conv.2} parent=0 // loop_body
    %s16 = ssub.s32 %s11, 1
    %s17 = ssub.s32 %s11, 2
    %s24 = sadd.s32 1, %s19
    %p25 = scmp.ge.s32.totalorder %s24, 1
    %s26 = scalar_select %p25, 0, %s24
    %s27 = sadd.s32 1, %s18
    %s28 = scalar_select %p25, %s27, %s18
    %p29 = scmp.ge.s32.totalorder %s28, 2
    %s30 = scalar_select %p29, 0, %s28
    %s31 = ssub.s32 %s18, %s30
    %p32 = scmp.eq.s32.totalorder %s31, 0
    %s34 = sadd.s32 %s33, 1
    %s35 = scalar_select %p32, %s33, %s34
    %p38 = pneg %p32
    %p39 = scmp.eq.s32.totalorder %s11, 1
    %p40 = por %p38, %p39
    %p41 = scmp.ne.s32.totalorder %s33, %s36
    %p42 = scmp.eq.s32.totalorder %s11, 0
    %p43 = por %p41, %p42
    %p44 = scmp.ne.s32.totalorder %s33, %s36
    %p45 = scmp.eq.s32.totalorder %s16, 1
    %p46 = por %p44, %p45
    %p47 = scmp.ne.s32.totalorder %s36, %s37
    %p48 = scmp.eq.s32.totalorder %s16, 0
    %p49 = por %p47, %p48
    %p50 = scmp.ne.s32.totalorder %s36, %s37
    %p51 = scmp.eq.s32.totalorder %s17, 1
    %p52 = por %p50, %p51
    %p54 = scmp.ne.s32.totalorder %s37, %s53
    %p55 = scmp.eq.s32.totalorder %s17, 0
    %p56 = por %p54, %p55
    %s58 = sadd.s32 %s57, 1
    %p61 = scmp.eq.s32.totalorder %s11, 1
    %p62 = scmp.ne.s32.totalorder %s57, %s59
    %p63 = scmp.eq.s32.totalorder %s11, 0
    %p64 = por %p62, %p63
    %p65 = scmp.ne.s32.totalorder %s57, %s59
    %p66 = scmp.eq.s32.totalorder %s16, 1
    %p67 = por %p65, %p66
    %p68 = scmp.ne.s32.totalorder %s59, %s60
    %p69 = scmp.eq.s32.totalorder %s16, 0
    %p70 = por %p68, %p69
    %p71 = scmp.ne.s32.totalorder %s59, %s60
    %p72 = scmp.eq.s32.totalorder %s17, 1
    %p73 = por %p71, %p72
    %p75 = scmp.ne.s32.totalorder %s60, %s74
    %p76 = scmp.eq.s32.totalorder %s17, 0
    %p77 = por %p75, %p76
    %s78 = ssub.s32 %s18, %s30
    %s79 = ssub.s32 %s19, %s26
    %s80 = sor.u32 %s78, %s79
    %p81 = scmp.eq.s32.totalorder %s80, 0
    %s83 = sadd.s32 %s82, 1
    %s84 = scalar_select %p81, %s82, %s83
    %p87 = pneg %p81
    %p88 = scmp.eq.s32.totalorder %s11, 1
    %p89 = por %p87, %p88
    %p90 = scmp.ne.s32.totalorder %s82, %s85
    %p91 = scmp.eq.s32.totalorder %s11, 0
    %p92 = por %p90, %p91
    %p93 = scmp.ne.s32.totalorder %s82, %s85
    %p94 = scmp.eq.s32.totalorder %s16, 1
    %p95 = por %p93, %p94
    %p96 = scmp.ne.s32.totalorder %s85, %s86
    %p97 = scmp.eq.s32.totalorder %s16, 0
    %p98 = por %p96, %p97
    %p99 = scmp.ne.s32.totalorder %s85, %s86
    %p100 = scmp.eq.s32.totalorder %s17, 1
    %p101 = por %p99, %p100
    %p103 = scmp.ne.s32.totalorder %s86, %s102
    %p104 = scmp.eq.s32.totalorder %s17, 0
    %p105 = por %p103, %p104
    %s106 = ssub.s32 %s18, %s30
    %s107 = ssub.s32 %s19, %s26
    %s108 = sor.u32 %s106, %s107
    %p109 = scmp.eq.s32.totalorder %s108, 0
    %s111 = sadd.s32 %s110, 1
    %s112 = scalar_select %p109, %s110, %s111
    %p115 = pneg %p109
    %p116 = scmp.eq.s32.totalorder %s11, 1
    %p117 = por %p115, %p116
    %p118 = scmp.ne.s32.totalorder %s110, %s113
    %p119 = scmp.eq.s32.totalorder %s11, 0
    %p120 = por %p118, %p119
    %p121 = scmp.ne.s32.totalorder %s110, %s113
    %p122 = scmp.eq.s32.totalorder %s16, 1
    %p123 = por %p121, %p122
    %p124 = scmp.ne.s32.totalorder %s113, %s114
    %p125 = scmp.eq.s32.totalorder %s16, 0
    %p126 = por %p124, %p125
    %p127 = scmp.ne.s32.totalorder %s113, %s114
    %p128 = scmp.eq.s32.totalorder %s17, 1
    %p129 = por %p127, %p128
    %p131 = scmp.ne.s32.totalorder %s114, %s130
    %p132 = scmp.eq.s32.totalorder %s17, 0
    %p133 = por %p131, %p132
    %s134 = ssub.s32 %s18, %s30
    %s135 = ssub.s32 %s19, %s26
    %s136 = sor.u32 %s134, %s135
    %p137 = scmp.eq.s32.totalorder %s136, 0
    %s139 = sadd.s32 %s138, 1
    %s140 = scalar_select %p137, %s138, %s139
    %p143 = pneg %p137
    %p144 = scmp.eq.s32.totalorder %s11, 1
    %p145 = por %p143, %p144
    %p146 = scmp.ne.s32.totalorder %s138, %s141
    %p147 = scmp.eq.s32.totalorder %s11, 0
    %p148 = por %p146, %p147
    %p149 = scmp.ne.s32.totalorder %s138, %s141
    %p150 = scmp.eq.s32.totalorder %s16, 1
    %p151 = por %p149, %p150
    %p152 = scmp.ne.s32.totalorder %s141, %s142
    %p153 = scmp.eq.s32.totalorder %s16, 0
    %p154 = por %p152, %p153
    %p155 = scmp.ne.s32.totalorder %s141, %s142
    %p156 = scmp.eq.s32.totalorder %s17, 1
    %p157 = por %p155, %p156
    %p159 = scmp.ne.s32.totalorder %s142, %s158
    %p160 = scmp.eq.s32.totalorder %s17, 0
    %p161 = por %p159, %p160
    %p162 = scmp.le.s32.totalorder 1, %s11
    %p163 = scmp.lt.s32.totalorder %s11, 3
    %p164 = pnand %p162, %p163
    %p165 = pneg %p164
    // Predicated region
    $region9: #{basic_conv.2} parent=5 // pred_check
      _
    $region10: #{basic_conv.2} parent=5 // pred_check_branch
      %167 = sbr.rel (%p164) target = $region12
    $region11: #{basic_conv.2} parent=5 // pred_region
      %s168 = ssub.s32 %s11, 1
      // Predicated region
      $region13: #{basic_conv.2} parent=11 // pred_check
        %p169 = pneg %p70
      $region14: #{basic_conv.2} parent=11 // pred_check_branch
        %171 = sbr.rel (%p169) target = $region16
      $region15: #{basic_conv.2} parent=11 // pred_region
        _
      $region16: #{basic_conv.2} parent=11 // pred_fallthru
        _
    $region12: #{basic_conv.2} parent=5 // pred_fallthru
      _
    %p172 = scmp.lt.s32.totalorder %s11, 2
    // Predicated region
    $region17: #{basic_conv.2} parent=5 // pred_check
      %p173 = pneg %p172
    $region18: #{basic_conv.2} parent=5 // pred_check_branch
      %175 = sbr.rel (%p173) target = $region20
    $region19: #{basic_conv.2} parent=5 // pred_region
      // Predicated region
      $region21: #{basic_conv.2} parent=19 // pred_check
        %p176 = pneg %p43
      $region22: #{basic_conv.2} parent=19 // pred_check_branch
        %178 = sbr.rel (%p176) target = $region24
      $region23: #{basic_conv.2} parent=19 // pred_region
        %p179 = scmp.lt.s32.totalorder %s18, 1
        %s180 = scalar_select %p179, %s18, 1
        %s181 = smul.addr %s180, 54
        %s182 = smul.addr %s181, 4
        %s183 = scalar_lea.vmem %s0, %s182
      $region24: #{basic_conv.2} parent=19 // pred_fallthru
        _
    $region20: #{basic_conv.2} parent=5 // pred_fallthru
      _
    %p184 = scmp.le.s32.totalorder 1, %s11
    %p185 = scmp.lt.s32.totalorder %s11, 3
    %p186 = pnand %p184, %p185
    %p187 = pneg %p186
    // Predicated region
    $region25: #{basic_conv.2} parent=5 // pred_check
      _
    $region26: #{basic_conv.2} parent=5 // pred_check_branch
      %189 = sbr.rel (%p186) target = $region28
    $region27: #{basic_conv.2} parent=5 // pred_region
      %s190 = ssub.s32 %s11, 1
      %p191 = scmp.lt.s32.totalorder %s20, 1
      %s192 = scalar_select %p191, %s20, 1
      %s193 = smul.addr %s192, 54
      %s194 = smul.addr %s193, 4
      %s195 = scalar_lea.vmem %s0, %s194
      %p196 = pneg %p49
      %p197 = pneg %p46
      %p198 = pneg %p70
      %p199 = pneg %p67
      %p200 = pneg %p98
      %p201 = pneg %p95
      %s202 = smul.u32 32, %s21
      %p203 = scmp.lt.s32.totalorder %s20, 1
      %s204 = scalar_select %p203, %s20, 1
      %p205 = scmp.lt.s32.totalorder %s202, 31
      %s206 = scalar_select %p205, %s202, 31
      %s207 = smul.addr %s204, 32
      %s208 = sadd.s32 %s206, %s207
      %s209 = smul.addr %s208, 4
      %s210 = scalar_lea.vmem %s2, %s209
      %p211 = pneg %p126
      %p212 = pneg %p123
      %p213 = scmp.lt.s32.totalorder %s20, 1
      %s214 = scalar_select %p213, %s20, 1
      %p215 = scmp.lt.s32.totalorder %s21, 0
      %s216 = scalar_select %p215, %s21, 0
      %s217 = sadd.s32 %s216, %s214
      %s218 = scalar_lea.vmem %s3, %s217
      %p219 = pneg %p154
      %p220 = pneg %p151
      %p221 = scmp.lt.s32.totalorder %s20, 1
      %s222 = scalar_select %p221, %s20, 1
      %p223 = scmp.lt.s32.totalorder %s21, 0
      %s224 = scalar_select %p223, %s21, 0
      %s225 = sadd.s32 %s224, %s222
      %s226 = scalar_lea.vmem %s4, %s225
      %p227 = scmp.lt.s32.totalorder %s20, 1
      %s228 = scalar_select %p227, %s20, 1
      %s229 = smul.addr %s228, 54
      %s230 = smul.addr %s229, 4
      %s231 = scalar_lea.vmem %s0, %s230
      %s232 = smul.u32 32, %s21
      %p233 = scmp.lt.s32.totalorder %s20, 1
      %s234 = scalar_select %p233, %s20, 1
      %p235 = scmp.lt.s32.totalorder %s232, 31
      %s236 = scalar_select %p235, %s232, 31
      %s237 = smul.addr %s234, 32
      %s238 = sadd.s32 %s236, %s237
      %s239 = smul.addr %s238, 4
      %s240 = scalar_lea.vmem %s2, %s239
      %s241 = smul.u32 32, %s21
      %p242 = scmp.lt.s32.totalorder %s20, 1
      %s243 = scalar_select %p242, %s20, 1
      %p244 = scmp.lt.s32.totalorder %s21, 0
      %s245 = scalar_select %p244, %s21, 0
      %s246 = sadd.s32 %s245, %s243
      %s247 = scalar_lea.vmem %s3, %s246
      %p248 = scmp.lt.s32.totalorder %s20, 1
      %s249 = scalar_select %p248, %s20, 1
      %p250 = scmp.lt.s32.totalorder %s21, 0
      %s251 = scalar_select %p250, %s21, 0
      %s252 = sadd.s32 %s251, %s249
      %s253 = scalar_lea.vmem %s4, %s252
      %s255 = smul.u32 %s21, 16
      %s256 = smul.u32 %s255, 3
      %s257 = smul.addr %s256, 4
      %s258 = scalar_lea.vmem %s231, %s257
      %v259 = vld [vmem:[%s258] sm:$0xf]
      %v260 = vld [vmem:[%s258 + $0x4] sm:$0xf]
      %v261 = vld [vmem:[%s258 + $0x8] sm:$0x1]
      %v262 = vld [vmem:[%s258 + $0xc] sm:$0xf]
      %v263 = vld [vmem:[%s258 + $0x10] sm:$0xf]
      %v264 = vld [vmem:[%s258 + $0x14] sm:$0x1]
      %v265 = vld [vmem:[%s258 + $0x18] sm:$0xf]
      %v266 = vld [vmem:[%s258 + $0x1c] sm:$0xf]
      %v267 = vld [vmem:[%s258 + $0x20] sm:$0x1]
      %v268 = vld [vmem:[%s258 + $0x24] sm:$0xf]
      %v269 = vld [vmem:[%s258 + $0x28] sm:$0xf]
      %v270 = vld [vmem:[%s258 + $0x2c] sm:$0x1]
      %v271 = vld [vmem:[%s258 + $0x30] sm:$0xf]
      %v272 = vld [vmem:[%s258 + $0x34] sm:$0xf]
      %v273 = vld [vmem:[%s258 + $0x38] sm:$0x1]
      %v274 = vld [vmem:[%s258 + $0x3c] sm:$0xf]
      %v275 = vld [vmem:[%s258 + $0x40] sm:$0xf]
      %v276 = vld [vmem:[%s258 + $0x44] sm:$0x1]
      %v277 = vld [vmem:[%s258 + $0x48] sm:$0xf]
      %v278 = vld [vmem:[%s258 + $0x4c] sm:$0xf]
      %v279 = vld [vmem:[%s258 + $0x50] sm:$0x1]
      %v280 = vld [vmem:[%s258 + $0x54] sm:$0xf]
      %v281 = vld [vmem:[%s258 + $0x58] sm:$0xf]
      %v282 = vld [vmem:[%s258 + $0x5c] sm:$0x1]
      %v283 = vld [vmem:[%s258 + $0x60] sm:$0xf]
      %v284 = vld [vmem:[%s258 + $0x64] sm:$0xf]
      %v285 = vld [vmem:[%s258 + $0x68] sm:$0x1]
      %v286 = vld [vmem:[%s258 + $0x6c] sm:$0xf]
      %v287 = vld [vmem:[%s258 + $0x70] sm:$0xf]
      %v288 = vld [vmem:[%s258 + $0x74] sm:$0x1]
      %v289 = vld [vmem:[%s258 + $0x78] sm:$0xf]
      %v290 = vld [vmem:[%s258 + $0x7c] sm:$0xf]
      %v291 = vld [vmem:[%s258 + $0x80] sm:$0x1]
      %v292 = vld [vmem:[%s258 + $0x84] sm:$0xf]
      %v293 = vld [vmem:[%s258 + $0x88] sm:$0xf]
      %v294 = vld [vmem:[%s258 + $0x8c] sm:$0x1]
      %v295 = vld [vmem:[%s258 + $0x90] sm:$0xf]
      %v296 = vld [vmem:[%s258 + $0x94] sm:$0xf]
      %v297 = vld [vmem:[%s258 + $0x98] sm:$0x1]
      %v298 = vld [vmem:[%s258 + $0x9c] sm:$0xf]
      %v299 = vld [vmem:[%s258 + $0xa0] sm:$0xf]
      %v300 = vld [vmem:[%s258 + $0xa4] sm:$0x1]
      %v301 = vld [vmem:[%s258 + $0xa8] sm:$0xf]
      %v302 = vld [vmem:[%s258 + $0xac] sm:$0xf]
      %v303 = vld [vmem:[%s258 + $0xb0] sm:$0x1]
      %v304 = vld [vmem:[%s258 + $0xb4] sm:$0xf]
      %v305 = vld [vmem:[%s258 + $0xb8] sm:$0xf]
      %v306 = vld [vmem:[%s258 + $0xbc] sm:$0x1]
      %v307 = vld [vmem:[%s258 + $0xc0] sm:$0xf]
      %v308 = vld [vmem:[%s258 + $0xc4] sm:$0xf]
      %v309 = vld [vmem:[%s258 + $0xc8] sm:$0x1]
      %v310 = vld [vmem:[%s258 + $0xcc] sm:$0xf]
      %v311 = vld [vmem:[%s258 + $0xd0] sm:$0xf]
      %v312 = vld [vmem:[%s258 + $0xd4] sm:$0x1]
      %v345 = vunpack.c.l.b16 %v259
      %v346 = vunpack.c.l.b16 %v260
      %v347 = vunpack.c.l.b16 %v262
      %v348 = vunpack.c.l.b16 %v263
      %v349 = vunpack.c.l.b16 %v265
      %v350 = vunpack.c.l.b16 %v266
      %v351 = vunpack.c.l.b16 %v268
      %v352 = vunpack.c.l.b16 %v269
      %v353 = vunpack.c.l.b16 %v271
      %v354 = vunpack.c.l.b16 %v272
      %v355 = vunpack.c.l.b16 %v274
      %v356 = vunpack.c.l.b16 %v275
      %v357 = vunpack.c.l.b16 %v277
      %v358 = vunpack.c.l.b16 %v278
      %v359 = vunpack.c.l.b16 %v280
      %v360 = vunpack.c.l.b16 %v281
      %v361 = vunpack.c.l.b16 %v283
      %v362 = vunpack.c.l.b16 %v284
      %v363 = vunpack.c.l.b16 %v286
      %v364 = vunpack.c.l.b16 %v287
      %v365 = vunpack.c.l.b16 %v289
      %v366 = vunpack.c.l.b16 %v290
      %v367 = vunpack.c.l.b16 %v292
      %v368 = vunpack.c.l.b16 %v293
      %v369 = vunpack.c.l.b16 %v295
      %v370 = vunpack.c.l.b16 %v296
      %v371 = vunpack.c.l.b16 %v298
      %v372 = vunpack.c.l.b16 %v299
      %v373 = vunpack.c.l.b16 %v301
      %v374 = vunpack.c.l.b16 %v302
      %v375 = vunpack.c.l.b16 %v304
      %v376 = vunpack.c.l.b16 %v305
      %v377 = vpack.c.b16 %v346, %v345
      %v378 = vpack.c.b16 %v348, %v347
      %v379 = vpack.c.b16 %v350, %v349
      %v380 = vpack.c.b16 %v352, %v351
      %v381 = vpack.c.b16 %v354, %v353
      %v382 = vpack.c.b16 %v356, %v355
      %v383 = vpack.c.b16 %v358, %v357
      %v384 = vpack.c.b16 %v360, %v359
      %v385 = vpack.c.b16 %v362, %v361
      %v386 = vpack.c.b16 %v364, %v363
      %v387 = vpack.c.b16 %v366, %v365
      %v388 = vpack.c.b16 %v368, %v367
      %v389 = vpack.c.b16 %v370, %v369
      %v390 = vpack.c.b16 %v372, %v371
      %v391 = vpack.c.b16 %v374, %v373
      %v392 = vpack.c.b16 %v376, %v375
      %v409 = vunpack.c.l.b16 %v261
      %v410 = vunpack.c.l.b16 %v264
      %v411 = vunpack.c.l.b16 %v267
      %v412 = vunpack.c.l.b16 %v270
      %v413 = vunpack.c.l.b16 %v273
      %v414 = vunpack.c.l.b16 %v276
      %v415 = vunpack.c.l.b16 %v279
      %v416 = vunpack.c.l.b16 %v282
      %v417 = vunpack.c.l.b16 %v285
      %v418 = vunpack.c.l.b16 %v288
      %v419 = vunpack.c.l.b16 %v291
      %v420 = vunpack.c.l.b16 %v294
      %v421 = vunpack.c.l.b16 %v297
      %v422 = vunpack.c.l.b16 %v300
      %v423 = vunpack.c.l.b16 %v303
      %v424 = vunpack.c.l.b16 %v306
      %v425 = vpack.c.b16 %v409, %v409
      %v426 = vpack.c.b16 %v410, %v410
      %v427 = vpack.c.b16 %v411, %v411
      %v428 = vpack.c.b16 %v412, %v412
      %v429 = vpack.c.b16 %v413, %v413
      %v430 = vpack.c.b16 %v414, %v414
      %v431 = vpack.c.b16 %v415, %v415
      %v432 = vpack.c.b16 %v416, %v416
      %v433 = vpack.c.b16 %v417, %v417
      %v434 = vpack.c.b16 %v418, %v418
      %v435 = vpack.c.b16 %v419, %v419
      %v436 = vpack.c.b16 %v420, %v420
      %v437 = vpack.c.b16 %v421, %v421
      %v438 = vpack.c.b16 %v422, %v422
      %v439 = vpack.c.b16 %v423, %v423
      %v440 = vpack.c.b16 %v424, %v424
      %vm441 = vsmask.f32 7424
      %v443 = vshrl.u32 %v377, 16
      %v445 = vshll.u32 %v377, 16
      %v447 = vrot.slane %v445, 1
      %v448 = vor.u32 %v443, %v447
      %v450 = vshll.u32 %v425, 16
      %v452 = vrot.slane %v450, 1
      %v453 = vsel %vm441, %v448, %v452
      %v455 = vshrl.u32 %v378, 16
      %v457 = vshll.u32 %v378, 16
      %v459 = vrot.slane %v457, 1
      %v460 = vor.u32 %v455, %v459
      %v462 = vshll.u32 %v426, 16
      %v464 = vrot.slane %v462, 1
      %v465 = vsel %vm441, %v460, %v464
      %v467 = vshrl.u32 %v379, 16
      %v469 = vshll.u32 %v379, 16
      %v471 = vrot.slane %v469, 1
      %v472 = vor.u32 %v467, %v471
      %v474 = vshll.u32 %v427, 16
      %v476 = vrot.slane %v474, 1
      %v477 = vsel %vm441, %v472, %v476
      %v479 = vshrl.u32 %v380, 16
      %v481 = vshll.u32 %v380, 16
      %v483 = vrot.slane %v481, 1
      %v484 = vor.u32 %v479, %v483
      %v486 = vshll.u32 %v428, 16
      %v488 = vrot.slane %v486, 1
      %v489 = vsel %vm441, %v484, %v488
      %v491 = vshrl.u32 %v381, 16
      %v493 = vshll.u32 %v381, 16
      %v495 = vrot.slane %v493, 1
      %v496 = vor.u32 %v491, %v495
      %v498 = vshll.u32 %v429, 16
      %v500 = vrot.slane %v498, 1
      %v501 = vsel %vm441, %v496, %v500
      %v503 = vshrl.u32 %v382, 16
      %v505 = vshll.u32 %v382, 16
      %v507 = vrot.slane %v505, 1
      %v508 = vor.u32 %v503, %v507
      %v510 = vshll.u32 %v430, 16
      %v512 = vrot.slane %v510, 1
      %v513 = vsel %vm441, %v508, %v512
      %v515 = vshrl.u32 %v383, 16
      %v517 = vshll.u32 %v383, 16
      %v519 = vrot.slane %v517, 1
      %v520 = vor.u32 %v515, %v519
      %v522 = vshll.u32 %v431, 16
      %v524 = vrot.slane %v522, 1
      %v525 = vsel %vm441, %v520, %v524
      %v527 = vshrl.u32 %v384, 16
      %v529 = vshll.u32 %v384, 16
      %v531 = vrot.slane %v529, 1
      %v532 = vor.u32 %v527, %v531
      %v534 = vshll.u32 %v432, 16
      %v536 = vrot.slane %v534, 1
      %v537 = vsel %vm441, %v532, %v536
      %v539 = vshrl.u32 %v385, 16
      %v541 = vshll.u32 %v385, 16
      %v543 = vrot.slane %v541, 1
      %v544 = vor.u32 %v539, %v543
      %v546 = vshll.u32 %v433, 16
      %v548 = vrot.slane %v546, 1
      %v549 = vsel %vm441, %v544, %v548
      %v551 = vshrl.u32 %v386, 16
      %v553 = vshll.u32 %v386, 16
      %v555 = vrot.slane %v553, 1
      %v556 = vor.u32 %v551, %v555
      %v558 = vshll.u32 %v434, 16
      %v560 = vrot.slane %v558, 1
      %v561 = vsel %vm441, %v556, %v560
      %v563 = vshrl.u32 %v387, 16
      %v565 = vshll.u32 %v387, 16
      %v567 = vrot.slane %v565, 1
      %v568 = vor.u32 %v563, %v567
      %v570 = vshll.u32 %v435, 16
      %v572 = vrot.slane %v570, 1
      %v573 = vsel %vm441, %v568, %v572
      %v575 = vshrl.u32 %v388, 16
      %v577 = vshll.u32 %v388, 16
      %v579 = vrot.slane %v577, 1
      %v580 = vor.u32 %v575, %v579
      %v582 = vshll.u32 %v436, 16
      %v584 = vrot.slane %v582, 1
      %v585 = vsel %vm441, %v580, %v584
      %v587 = vshrl.u32 %v389, 16
      %v589 = vshll.u32 %v389, 16
      %v591 = vrot.slane %v589, 1
      %v592 = vor.u32 %v587, %v591
      %v594 = vshll.u32 %v437, 16
      %v596 = vrot.slane %v594, 1
      %v597 = vsel %vm441, %v592, %v596
      %v599 = vshrl.u32 %v390, 16
      %v601 = vshll.u32 %v390, 16
      %v603 = vrot.slane %v601, 1
      %v604 = vor.u32 %v599, %v603
      %v606 = vshll.u32 %v438, 16
      %v608 = vrot.slane %v606, 1
      %v609 = vsel %vm441, %v604, %v608
      %v611 = vshrl.u32 %v391, 16
      %v613 = vshll.u32 %v391, 16
      %v615 = vrot.slane %v613, 1
      %v616 = vor.u32 %v611, %v615
      %v618 = vshll.u32 %v439, 16
      %v620 = vrot.slane %v618, 1
      %v621 = vsel %vm441, %v616, %v620
      %v623 = vshrl.u32 %v392, 16
      %v625 = vshll.u32 %v392, 16
      %v627 = vrot.slane %v625, 1
      %v628 = vor.u32 %v623, %v627
      %v630 = vshll.u32 %v440, 16
      %v632 = vrot.slane %v630, 1
      %v633 = vsel %vm441, %v628, %v632
      %634 = vrot.lane.b32.xlu0 %v453, 4
      %v635 = vpop.permute.xlu0 %634
      %636 = vrot.lane.b32.xlu0 %v465, 4
      %v637 = vpop.permute.xlu0 %636
      %638 = vrot.lane.b32.xlu0 %v477, 4
      %v639 = vpop.permute.xlu0 %638
      %640 = vrot.lane.b32.xlu0 %v489, 4
      %v641 = vpop.permute.xlu0 %640
      %642 = vrot.lane.b32.xlu0 %v501, 4
      %v643 = vpop.permute.xlu0 %642
      %644 = vrot.lane.b32.xlu0 %v513, 4
      %v645 = vpop.permute.xlu0 %644
      %646 = vrot.lane.b32.xlu0 %v525, 4
      %v647 = vpop.permute.xlu0 %646
      %648 = vrot.lane.b32.xlu0 %v537, 4
      %v649 = vpop.permute.xlu0 %648
      %650 = vrot.lane.b32.xlu0 %v549, 4
      %v651 = vpop.permute.xlu0 %650
      %652 = vrot.lane.b32.xlu0 %v561, 4
      %v653 = vpop.permute.xlu0 %652
      %654 = vrot.lane.b32.xlu0 %v573, 4
      %v655 = vpop.permute.xlu0 %654
      %656 = vrot.lane.b32.xlu0 %v585, 4
      %v657 = vpop.permute.xlu0 %656
      %658 = vrot.lane.b32.xlu0 %v597, 4
      %v659 = vpop.permute.xlu0 %658
      %660 = vrot.lane.b32.xlu0 %v609, 4
      %v661 = vpop.permute.xlu0 %660
      %662 = vrot.lane.b32.xlu0 %v621, 4
      %v663 = vpop.permute.xlu0 %662
      %664 = vrot.lane.b32.xlu0 %v633, 4
      %v665 = vpop.permute.xlu0 %664
      %vm666 = vcmask 1046528
      %v667 = vrot.slane %v377, 1
      %v668 = vrot.slane %v425, 1
      %v669 = vsel %vm666, %v667, %v668
      %v670 = vrot.slane %v378, 1
      %v671 = vrot.slane %v426, 1
      %v672 = vsel %vm666, %v670, %v671
      %v673 = vrot.slane %v379, 1
      %v674 = vrot.slane %v427, 1
      %v675 = vsel %vm666, %v673, %v674
      %v676 = vrot.slane %v380, 1
      %v677 = vrot.slane %v428, 1
      %v678 = vsel %vm666, %v676, %v677
      %v679 = vrot.slane %v381, 1
      %v680 = vrot.slane %v429, 1
      %v681 = vsel %vm666, %v679, %v680
      %v682 = vrot.slane %v382, 1
      %v683 = vrot.slane %v430, 1
      %v684 = vsel %vm666, %v682, %v683
      %v685 = vrot.slane %v383, 1
      %v686 = vrot.slane %v431, 1
      %v687 = vsel %vm666, %v685, %v686
      %v688 = vrot.slane %v384, 1
      %v689 = vrot.slane %v432, 1
      %v690 = vsel %vm666, %v688, %v689
      %v691 = vrot.slane %v385, 1
      %v692 = vrot.slane %v433, 1
      %v693 = vsel %vm666, %v691, %v692
      %v694 = vrot.slane %v386, 1
      %v695 = vrot.slane %v434, 1
      %v696 = vsel %vm666, %v694, %v695
      %v697 = vrot.slane %v387, 1
      %v698 = vrot.slane %v435, 1
      %v699 = vsel %vm666, %v697, %v698
      %v700 = vrot.slane %v388, 1
      %v701 = vrot.slane %v436, 1
      %v702 = vsel %vm666, %v700, %v701
      %v703 = vrot.slane %v389, 1
      %v704 = vrot.slane %v437, 1
      %v705 = vsel %vm666, %v703, %v704
      %v706 = vrot.slane %v390, 1
      %v707 = vrot.slane %v438, 1
      %v708 = vsel %vm666, %v706, %v707
      %v709 = vrot.slane %v391, 1
      %v710 = vrot.slane %v439, 1
      %v711 = vsel %vm666, %v709, %v710
      %v712 = vrot.slane %v392, 1
      %v713 = vrot.slane %v440, 1
      %v714 = vsel %vm666, %v712, %v713
      %715 = vrot.lane.b32.xlu0 %v669, 8
      %v716 = vpop.permute.xlu0 %715
      %717 = vrot.lane.b32.xlu0 %v672, 8
      %v718 = vpop.permute.xlu0 %717
      %719 = vrot.lane.b32.xlu0 %v675, 8
      %v720 = vpop.permute.xlu0 %719
      %721 = vrot.lane.b32.xlu0 %v678, 8
      %v722 = vpop.permute.xlu0 %721
      %723 = vrot.lane.b32.xlu0 %v681, 8
      %v724 = vpop.permute.xlu0 %723
      %725 = vrot.lane.b32.xlu0 %v684, 8
      %v726 = vpop.permute.xlu0 %725
      %727 = vrot.lane.b32.xlu0 %v687, 8
      %v728 = vpop.permute.xlu0 %727
      %729 = vrot.lane.b32.xlu0 %v690, 8
      %v730 = vpop.permute.xlu0 %729
      %731 = vrot.lane.b32.xlu0 %v693, 8
      %v732 = vpop.permute.xlu0 %731
      %733 = vrot.lane.b32.xlu0 %v696, 8
      %v734 = vpop.permute.xlu0 %733
      %735 = vrot.lane.b32.xlu0 %v699, 8
      %v736 = vpop.permute.xlu0 %735
      %737 = vrot.lane.b32.xlu0 %v702, 8
      %v738 = vpop.permute.xlu0 %737
      %739 = vrot.lane.b32.xlu0 %v705, 8
      %v740 = vpop.permute.xlu0 %739
      %741 = vrot.lane.b32.xlu0 %v708, 8
      %v742 = vpop.permute.xlu0 %741
      %743 = vrot.lane.b32.xlu0 %v711, 8
      %v744 = vpop.permute.xlu0 %743
      %745 = vrot.lane.b32.xlu0 %v714, 8
      %v746 = vpop.permute.xlu0 %745
      %v749 = vunpack.c.l.b16 %v307
      %v750 = vunpack.c.l.b16 %v308
      %v751 = vpack.c.b16 %v750, %v749
      %752 = vrot.lane.b32.xlu0 %v378, 12
      %v753 = vpop.permute.xlu0 %752
      %754 = vrot.lane.b32.xlu0 %v379, 12
      %v755 = vpop.permute.xlu0 %754
      %756 = vrot.lane.b32.xlu0 %v380, 12
      %v757 = vpop.permute.xlu0 %756
      %758 = vrot.lane.b32.xlu0 %v381, 12
      %v759 = vpop.permute.xlu0 %758
      %760 = vrot.lane.b32.xlu0 %v382, 12
      %v761 = vpop.permute.xlu0 %760
      %762 = vrot.lane.b32.xlu0 %v383, 12
      %v763 = vpop.permute.xlu0 %762
      %764 = vrot.lane.b32.xlu0 %v384, 12
      %v765 = vpop.permute.xlu0 %764
      %766 = vrot.lane.b32.xlu0 %v385, 12
      %v767 = vpop.permute.xlu0 %766
      %768 = vrot.lane.b32.xlu0 %v386, 12
      %v769 = vpop.permute.xlu0 %768
      %770 = vrot.lane.b32.xlu0 %v387, 12
      %v771 = vpop.permute.xlu0 %770
      %772 = vrot.lane.b32.xlu0 %v388, 12
      %v773 = vpop.permute.xlu0 %772
      %774 = vrot.lane.b32.xlu0 %v389, 12
      %v775 = vpop.permute.xlu0 %774
      %776 = vrot.lane.b32.xlu0 %v390, 12
      %v777 = vpop.permute.xlu0 %776
      %778 = vrot.lane.b32.xlu0 %v391, 12
      %v779 = vpop.permute.xlu0 %778
      %780 = vrot.lane.b32.xlu0 %v392, 12
      %v781 = vpop.permute.xlu0 %780
      %782 = vrot.lane.b32.xlu0 %v751, 12
      %v783 = vpop.permute.xlu0 %782
      %v785 = vunpack.c.l.b16 %v309
      %v786 = vpack.c.b16 %v785, %v785
      %v788 = vshrl.u32 %v751, 16
      %v790 = vshll.u32 %v751, 16
      %v792 = vrot.slane %v790, 1
      %v793 = vor.u32 %v788, %v792
      %v795 = vshll.u32 %v786, 16
      %v797 = vrot.slane %v795, 1
      %v798 = vsel %vm441, %v793, %v797
      %799 = vrot.lane.b32.xlu0 %v465, 16
      %v800 = vpop.permute.xlu0 %799
      %801 = vrot.lane.b32.xlu0 %v477, 16
      %v802 = vpop.permute.xlu0 %801
      %803 = vrot.lane.b32.xlu0 %v489, 16
      %v804 = vpop.permute.xlu0 %803
      %805 = vrot.lane.b32.xlu0 %v501, 16
      %v806 = vpop.permute.xlu0 %805
      %807 = vrot.lane.b32.xlu0 %v513, 16
      %v808 = vpop.permute.xlu0 %807
      %809 = vrot.lane.b32.xlu0 %v525, 16
      %v810 = vpop.permute.xlu0 %809
      %811 = vrot.lane.b32.xlu0 %v537, 16
      %v812 = vpop.permute.xlu0 %811
      %813 = vrot.lane.b32.xlu0 %v549, 16
      %v814 = vpop.permute.xlu0 %813
      %815 = vrot.lane.b32.xlu0 %v561, 16
      %v816 = vpop.permute.xlu0 %815
      %817 = vrot.lane.b32.xlu0 %v573, 16
      %v818 = vpop.permute.xlu0 %817
      %819 = vrot.lane.b32.xlu0 %v585, 16
      %v820 = vpop.permute.xlu0 %819
      %821 = vrot.lane.b32.xlu0 %v597, 16
      %v822 = vpop.permute.xlu0 %821
      %823 = vrot.lane.b32.xlu0 %v609, 16
      %v824 = vpop.permute.xlu0 %823
      %825 = vrot.lane.b32.xlu0 %v621, 16
      %v826 = vpop.permute.xlu0 %825
      %827 = vrot.lane.b32.xlu0 %v633, 16
      %v828 = vpop.permute.xlu0 %827
      %829 = vrot.lane.b32.xlu0 %v798, 16
      %v830 = vpop.permute.xlu0 %829
      %v831 = vrot.slane %v751, 1
      %v832 = vrot.slane %v786, 1
      %v833 = vsel %vm666, %v831, %v832
      %834 = vrot.lane.b32.xlu0 %v672, 20
      %v835 = vpop.permute.xlu0 %834
      %836 = vrot.lane.b32.xlu0 %v675, 20
      %v837 = vpop.permute.xlu0 %836
      %838 = vrot.lane.b32.xlu0 %v678, 20
      %v839 = vpop.permute.xlu0 %838
      %840 = vrot.lane.b32.xlu0 %v681, 20
      %v841 = vpop.permute.xlu0 %840
      %842 = vrot.lane.b32.xlu0 %v684, 20
      %v843 = vpop.permute.xlu0 %842
      %844 = vrot.lane.b32.xlu0 %v687, 20
      %v845 = vpop.permute.xlu0 %844
      %846 = vrot.lane.b32.xlu0 %v690, 20
      %v847 = vpop.permute.xlu0 %846
      %848 = vrot.lane.b32.xlu0 %v693, 20
      %v849 = vpop.permute.xlu0 %848
      %850 = vrot.lane.b32.xlu0 %v696, 20
      %v851 = vpop.permute.xlu0 %850
      %852 = vrot.lane.b32.xlu0 %v699, 20
      %v853 = vpop.permute.xlu0 %852
      %854 = vrot.lane.b32.xlu0 %v702, 20
      %v855 = vpop.permute.xlu0 %854
      %856 = vrot.lane.b32.xlu0 %v705, 20
      %v857 = vpop.permute.xlu0 %856
      %858 = vrot.lane.b32.xlu0 %v708, 20
      %v859 = vpop.permute.xlu0 %858
      %860 = vrot.lane.b32.xlu0 %v711, 20
      %v861 = vpop.permute.xlu0 %860
      %862 = vrot.lane.b32.xlu0 %v714, 20
      %v863 = vpop.permute.xlu0 %862
      %864 = vrot.lane.b32.xlu0 %v833, 20
      %v865 = vpop.permute.xlu0 %864
      %v868 = vunpack.c.l.b16 %v310
      %v869 = vunpack.c.l.b16 %v311
      %v870 = vpack.c.b16 %v869, %v868
      %871 = vrot.lane.b32.xlu0 %v379, 24
      %v872 = vpop.permute.xlu0 %871
      %873 = vrot.lane.b32.xlu0 %v380, 24
      %v874 = vpop.permute.xlu0 %873
      %875 = vrot.lane.b32.xlu0 %v381, 24
      %v876 = vpop.permute.xlu0 %875
      %877 = vrot.lane.b32.xlu0 %v382, 24
      %v878 = vpop.permute.xlu0 %877
      %879 = vrot.lane.b32.xlu0 %v383, 24
      %v880 = vpop.permute.xlu0 %879
      %881 = vrot.lane.b32.xlu0 %v384, 24
      %v882 = vpop.permute.xlu0 %881
      %883 = vrot.lane.b32.xlu0 %v385, 24
      %v884 = vpop.permute.xlu0 %883
      %885 = vrot.lane.b32.xlu0 %v386, 24
      %v886 = vpop.permute.xlu0 %885
      %887 = vrot.lane.b32.xlu0 %v387, 24
      %v888 = vpop.permute.xlu0 %887
      %889 = vrot.lane.b32.xlu0 %v388, 24
      %v890 = vpop.permute.xlu0 %889
      %891 = vrot.lane.b32.xlu0 %v389, 24
      %v892 = vpop.permute.xlu0 %891
      %893 = vrot.lane.b32.xlu0 %v390, 24
      %v894 = vpop.permute.xlu0 %893
      %895 = vrot.lane.b32.xlu0 %v391, 24
      %v896 = vpop.permute.xlu0 %895
      %897 = vrot.lane.b32.xlu0 %v392, 24
      %v898 = vpop.permute.xlu0 %897
      %899 = vrot.lane.b32.xlu0 %v751, 24
      %v900 = vpop.permute.xlu0 %899
      %901 = vrot.lane.b32.xlu0 %v870, 24
      %v902 = vpop.permute.xlu0 %901
      %v904 = vunpack.c.l.b16 %v312
      %v905 = vpack.c.b16 %v904, %v904
      %v907 = vshrl.u32 %v870, 16
      %v909 = vshll.u32 %v870, 16
      %v911 = vrot.slane %v909, 1
      %v912 = vor.u32 %v907, %v911
      %v914 = vshll.u32 %v905, 16
      %v916 = vrot.slane %v914, 1
      %v917 = vsel %vm441, %v912, %v916
      %918 = vrot.lane.b32.xlu0 %v477, 28
      %v919 = vpop.permute.xlu0 %918
      %920 = vrot.lane.b32.xlu0 %v489, 28
      %v921 = vpop.permute.xlu0 %920
      %922 = vrot.lane.b32.xlu0 %v501, 28
      %v923 = vpop.permute.xlu0 %922
      %924 = vrot.lane.b32.xlu0 %v513, 28
      %v925 = vpop.permute.xlu0 %924
      %926 = vrot.lane.b32.xlu0 %v525, 28
      %v927 = vpop.permute.xlu0 %926
      %928 = vrot.lane.b32.xlu0 %v537, 28
      %v929 = vpop.permute.xlu0 %928
      %930 = vrot.lane.b32.xlu0 %v549, 28
      %v931 = vpop.permute.xlu0 %930
      %932 = vrot.lane.b32.xlu0 %v561, 28
      %v933 = vpop.permute.xlu0 %932
      %934 = vrot.lane.b32.xlu0 %v573, 28
      %v935 = vpop.permute.xlu0 %934
      %936 = vrot.lane.b32.xlu0 %v585, 28
      %v937 = vpop.permute.xlu0 %936
      %938 = vrot.lane.b32.xlu0 %v597, 28
      %v939 = vpop.permute.xlu0 %938
      %940 = vrot.lane.b32.xlu0 %v609, 28
      %v941 = vpop.permute.xlu0 %940
      %942 = vrot.lane.b32.xlu0 %v621, 28
      %v943 = vpop.permute.xlu0 %942
      %944 = vrot.lane.b32.xlu0 %v633, 28
      %v945 = vpop.permute.xlu0 %944
      %946 = vrot.lane.b32.xlu0 %v798, 28
      %v947 = vpop.permute.xlu0 %946
      %948 = vrot.lane.b32.xlu0 %v917, 28
      %v949 = vpop.permute.xlu0 %948
      %v950 = vrot.slane %v870, 1
      %v951 = vrot.slane %v905, 1
      %v952 = vsel %vm666, %v950, %v951
      %953 = vrot.lane.b32.xlu0 %v675, 32
      %v954 = vpop.permute.xlu0 %953
      %955 = vrot.lane.b32.xlu0 %v678, 32
      %v956 = vpop.permute.xlu0 %955
      %957 = vrot.lane.b32.xlu0 %v681, 32
      %v958 = vpop.permute.xlu0 %957
      %959 = vrot.lane.b32.xlu0 %v684, 32
      %v960 = vpop.permute.xlu0 %959
      %961 = vrot.lane.b32.xlu0 %v687, 32
      %v962 = vpop.permute.xlu0 %961
      %963 = vrot.lane.b32.xlu0 %v690, 32
      %v964 = vpop.permute.xlu0 %963
      %965 = vrot.lane.b32.xlu0 %v693, 32
      %v966 = vpop.permute.xlu0 %965
      %967 = vrot.lane.b32.xlu0 %v696, 32
      %v968 = vpop.permute.xlu0 %967
      %969 = vrot.lane.b32.xlu0 %v699, 32
      %v970 = vpop.permute.xlu0 %969
      %971 = vrot.lane.b32.xlu0 %v702, 32
      %v972 = vpop.permute.xlu0 %971
      %973 = vrot.lane.b32.xlu0 %v705, 32
      %v974 = vpop.permute.xlu0 %973
      %975 = vrot.lane.b32.xlu0 %v708, 32
      %v976 = vpop.permute.xlu0 %975
      %977 = vrot.lane.b32.xlu0 %v711, 32
      %v978 = vpop.permute.xlu0 %977
      %979 = vrot.lane.b32.xlu0 %v714, 32
      %v980 = vpop.permute.xlu0 %979
      %981 = vrot.lane.b32.xlu0 %v833, 32
      %v982 = vpop.permute.xlu0 %981
      %983 = vrot.lane.b32.xlu0 %v952, 32
      %v984 = vpop.permute.xlu0 %983
      %vm985 = vcmask 31744
      %v987 = vsel %vm985, %v377, %v635
      %v989 = vsel %vm985, %v378, %v637
      %v991 = vsel %vm985, %v379, %v639
      %v993 = vsel %vm985, %v380, %v641
      %v995 = vsel %vm985, %v381, %v643
      %v997 = vsel %vm985, %v382, %v645
      %v999 = vsel %vm985, %v383, %v647
      %v1001 = vsel %vm985, %v384, %v649
      %v1003 = vsel %vm985, %v385, %v651
      %v1005 = vsel %vm985, %v386, %v653
      %v1007 = vsel %vm985, %v387, %v655
      %v1009 = vsel %vm985, %v388, %v657
      %v1011 = vsel %vm985, %v389, %v659
      %v1013 = vsel %vm985, %v390, %v661
      %v1015 = vsel %vm985, %v391, %v663
      %v1017 = vsel %vm985, %v392, %v665
      %vm1018 = vcmask 64512
      %v1020 = vsel %vm1018, %v987, %v716
      %v1022 = vsel %vm1018, %v989, %v718
      %v1024 = vsel %vm1018, %v991, %v720
      %v1026 = vsel %vm1018, %v993, %v722
      %v1028 = vsel %vm1018, %v995, %v724
      %v1030 = vsel %vm1018, %v997, %v726
      %v1032 = vsel %vm1018, %v999, %v728
      %v1034 = vsel %vm1018, %v1001, %v730
      %v1036 = vsel %vm1018, %v1003, %v732
      %v1038 = vsel %vm1018, %v1005, %v734
      %v1040 = vsel %vm1018, %v1007, %v736
      %v1042 = vsel %vm1018, %v1009, %v738
      %v1044 = vsel %vm1018, %v1011, %v740
      %v1046 = vsel %vm1018, %v1013, %v742
      %v1048 = vsel %vm1018, %v1015, %v744
      %v1050 = vsel %vm1018, %v1017, %v746
      %vm1051 = vcmask 97280
      %v1053 = vsel %vm1051, %v1020, %v753
      %v1055 = vsel %vm1051, %v1022, %v755
      %v1057 = vsel %vm1051, %v1024, %v757
      %v1059 = vsel %vm1051, %v1026, %v759
      %v1061 = vsel %vm1051, %v1028, %v761
      %v1063 = vsel %vm1051, %v1030, %v763
      %v1065 = vsel %vm1051, %v1032, %v765
      %v1067 = vsel %vm1051, %v1034, %v767
      %v1069 = vsel %vm1051, %v1036, %v769
      %v1071 = vsel %vm1051, %v1038, %v771
      %v1073 = vsel %vm1051, %v1040, %v773
      %v1075 = vsel %vm1051, %v1042, %v775
      %v1077 = vsel %vm1051, %v1044, %v777
      %v1079 = vsel %vm1051, %v1046, %v779
      %v1081 = vsel %vm1051, %v1048, %v781
      %v1083 = vsel %vm1051, %v1050, %v783
      %vm1084 = vcmask 130048
      %v1086 = vsel %vm1084, %v1053, %v800
      %v1088 = vsel %vm1084, %v1055, %v802
      %v1090 = vsel %vm1084, %v1057, %v804
      %v1092 = vsel %vm1084, %v1059, %v806
      %v1094 = vsel %vm1084, %v1061, %v808
      %v1096 = vsel %vm1084, %v1063, %v810
      %v1098 = vsel %vm1084, %v1065, %v812
      %v1100 = vsel %vm1084, %v1067, %v814
      %v1102 = vsel %vm1084, %v1069, %v816
      %v1104 = vsel %vm1084, %v1071, %v818
      %v1106 = vsel %vm1084, %v1073, %v820
      %v1108 = vsel %vm1084, %v1075, %v822
      %v1110 = vsel %vm1084, %v1077, %v824
      %v1112 = vsel %vm1084, %v1079, %v826
      %v1114 = vsel %vm1084, %v1081, %v828
      %v1116 = vsel %vm1084, %v1083, %v830
      %vm1117 = vcmask 162816
      %v1119 = vsel %vm1117, %v1086, %v835
      %v1121 = vsel %vm1117, %v1088, %v837
      %v1123 = vsel %vm1117, %v1090, %v839
      %v1125 = vsel %vm1117, %v1092, %v841
      %v1127 = vsel %vm1117, %v1094, %v843
      %v1129 = vsel %vm1117, %v1096, %v845
      %v1131 = vsel %vm1117, %v1098, %v847
      %v1133 = vsel %vm1117, %v1100, %v849
      %v1135 = vsel %vm1117, %v1102, %v851
      %v1137 = vsel %vm1117, %v1104, %v853
      %v1139 = vsel %vm1117, %v1106, %v855
      %v1141 = vsel %vm1117, %v1108, %v857
      %v1143 = vsel %vm1117, %v1110, %v859
      %v1145 = vsel %vm1117, %v1112, %v861
      %v1147 = vsel %vm1117, %v1114, %v863
      %v1149 = vsel %vm1117, %v1116, %v865
      %vm1150 = vcmask 195584
      %v1152 = vsel %vm1150, %v1119, %v872
      %v1154 = vsel %vm1150, %v1121, %v874
      %v1156 = vsel %vm1150, %v1123, %v876
      %v1158 = vsel %vm1150, %v1125, %v878
      %v1160 = vsel %vm1150, %v1127, %v880
      %v1162 = vsel %vm1150, %v1129, %v882
      %v1164 = vsel %vm1150, %v1131, %v884
      %v1166 = vsel %vm1150, %v1133, %v886
      %v1168 = vsel %vm1150, %v1135, %v888
      %v1170 = vsel %vm1150, %v1137, %v890
      %v1172 = vsel %vm1150, %v1139, %v892
      %v1174 = vsel %vm1150, %v1141, %v894
      %v1176 = vsel %vm1150, %v1143, %v896
      %v1178 = vsel %vm1150, %v1145, %v898
      %v1180 = vsel %vm1150, %v1147, %v900
      %v1182 = vsel %vm1150, %v1149, %v902
      %vm1183 = vcmask 228352
      %v1185 = vsel %vm1183, %v1152, %v919
      %v1187 = vsel %vm1183, %v1154, %v921
      %v1189 = vsel %vm1183, %v1156, %v923
      %v1191 = vsel %vm1183, %v1158, %v925
      %v1193 = vsel %vm1183, %v1160, %v927
      %v1195 = vsel %vm1183, %v1162, %v929
      %v1197 = vsel %vm1183, %v1164, %v931
      %v1199 = vsel %vm1183, %v1166, %v933
      %v1201 = vsel %vm1183, %v1168, %v935
      %v1203 = vsel %vm1183, %v1170, %v937
      %v1205 = vsel %vm1183, %v1172, %v939
      %v1207 = vsel %vm1183, %v1174, %v941
      %v1209 = vsel %vm1183, %v1176, %v943
      %v1211 = vsel %vm1183, %v1178, %v945
      %v1213 = vsel %vm1183, %v1180, %v947
      %v1215 = vsel %vm1183, %v1182, %v949
      %vm1216 = vcmask 261120
      %v1218 = vsel %vm1216, %v1185, %v954
      %v1220 = vsel %vm1216, %v1187, %v956
      %v1222 = vsel %vm1216, %v1189, %v958
      %v1224 = vsel %vm1216, %v1191, %v960
      %v1226 = vsel %vm1216, %v1193, %v962
      %v1228 = vsel %vm1216, %v1195, %v964
      %v1230 = vsel %vm1216, %v1197, %v966
      %v1232 = vsel %vm1216, %v1199, %v968
      %v1234 = vsel %vm1216, %v1201, %v970
      %v1236 = vsel %vm1216, %v1203, %v972
      %v1238 = vsel %vm1216, %v1205, %v974
      %v1240 = vsel %vm1216, %v1207, %v976
      %v1242 = vsel %vm1216, %v1209, %v978
      %v1244 = vsel %vm1216, %v1211, %v980
      %v1246 = vsel %vm1216, %v1213, %v982
      %v1248 = vsel %vm1216, %v1215, %v984
      %v1249 = vld [vmem:[%s1] sm:$0xf]
      %v1250 = vld [vmem:[%s1 + $0x4] sm:$0xf]
      %v1251 = vld [vmem:[%s1 + $0x8] sm:$0xf]
      %v1252 = vld [vmem:[%s1 + $0xc] sm:$0xf]
      %v1253 = vld [vmem:[%s1 + $0x10] sm:$0x3]
      %v1259 = vunpack.c.l.b16 %v1249
      %v1260 = vunpack.c.l.b16 %v1250
      %v1261 = vunpack.c.l.b16 %v1251
      %v1262 = vunpack.c.l.b16 %v1252
      %v1263 = vunpack.c.l.b16 %v1253
      %v1264 = vpack.c.b16 %v1260, %v1259
      %v1265 = vpack.c.b16 %v1262, %v1261
      %v1266 = vpack.c.b16 %v1263, %v1263
      %vm1269 = vcmask 293888
      %v1270 = vsel %vm1269, %v1218, 0
      %v1272 = vsel %vm1269, %v1220, 0
      %v1274 = vsel %vm1269, %v1222, 0
      %v1276 = vsel %vm1269, %v1224, 0
      %v1278 = vsel %vm1269, %v1226, 0
      %v1280 = vsel %vm1269, %v1228, 0
      %v1282 = vsel %vm1269, %v1230, 0
      %v1284 = vsel %vm1269, %v1232, 0
      %v1286 = vsel %vm1269, %v1234, 0
      %v1288 = vsel %vm1269, %v1236, 0
      %v1290 = vsel %vm1269, %v1238, 0
      %v1292 = vsel %vm1269, %v1240, 0
      %v1294 = vsel %vm1269, %v1242, 0
      %v1296 = vsel %vm1269, %v1244, 0
      %v1298 = vsel %vm1269, %v1246, 0
      %v1300 = vsel %vm1269, %v1248, 0
      %vm1302 = vcmask 1041408
      %v1304 = vsel %vm1302, %v1266, 0
      %1306 = vmatprep.subr.bf16.mxu0 0
      %1307 = vmatpush1.bf16.msra.mxu0 %v1264
      %1308 = vmatprep.subr.bf16.mxu0 0
      %1309 = vmatpush1.bf16.msra.mxu0 %v1265
      %1310 = vmatprep.subr.bf16.mxu0 0
      %1311 = vmatpush1.bf16.msra.mxu0 %v1304
      %1312 = vmatprep.subr.bf16.mxu0 0
      %1313 = vmatpush1.bf16.msra.mxu0 0
      %1314 = vmatprep.subr.bf16.mxu0 0
      %1315 = vmatpush1.bf16.msra.mxu0 0
      %1316 = vmatprep.subr.bf16.mxu0 0
      %1317 = vmatpush1.bf16.msra.mxu0 0
      %1318 = vmatprep.subr.bf16.mxu0 0
      %1319 = vmatpush1.bf16.msra.mxu0 0
      %1320 = vmatprep.subr.bf16.mxu0 0
      %1321 = vmatpush1.bf16.msra.mxu0 0
      %1322 = vmatprep.subr.bf16.mxu0 0
      %1323 = vmatpush1.bf16.msra.mxu0 0
      %1324 = vmatprep.subr.bf16.mxu0 0
      %1325 = vmatpush1.bf16.msra.mxu0 0
      %1326 = vmatprep.subr.bf16.mxu0 0
      %1327 = vmatpush1.bf16.msra.mxu0 0
      %1328 = vmatprep.subr.bf16.mxu0 0
      %1329 = vmatpush1.bf16.msra.mxu0 0
      %1330 = vmatprep.subr.bf16.mxu0 0
      %1331 = vmatpush1.bf16.msra.mxu0 0
      %1332 = vmatprep.subr.bf16.mxu0 0
      %1333 = vmatpush1.bf16.msra.mxu0 0
      %1334 = vmatprep.subr.bf16.mxu0 0
      %1335 = vmatpush1.bf16.msra.mxu0 0
      %1336 = vmatprep.subr.bf16.mxu0 0
      %1337 = vmatpush1.bf16.msra.mxu0 0
      %1338 = vmatprep.mubr.bf16.mxu0 0
      %1339 = vmatmul.mubr.bf16.gmra.mrb[0].mxu0 %v1270
      %v1340 = vpop.f32.mrb[0].mxu0
      %v1341 = vadd.f32 0.0, %v1340
      %v1342 = vpop.f32.mrb[0].mxu0
      %v1343 = vpop.f32.mrb[0].mxu0
      %v1344 = vadd.f32 0.0, %v1343
      %v1345 = vpop.f32.mrb[0].mxu0
      %1346 = vmatprep.mubr.bf16.mxu0 0
      %1347 = vmatmul.mubr.bf16.gmra.mrb[0].mxu0 %v1272
      %v1348 = vpop.f32.mrb[0].mxu0
      %v1349 = vadd.f32 0.0, %v1348
      %v1350 = vpop.f32.mrb[0].mxu0
      %v1351 = vpop.f32.mrb[0].mxu0
      %v1352 = vadd.f32 0.0, %v1351
      %v1353 = vpop.f32.mrb[0].mxu0
      %1354 = vmatprep.mubr.bf16.mxu0 0
      %1355 = vmatmul.mubr.bf16.gmra.mrb[0].mxu0 %v1274
      %v1356 = vpop.f32.mrb[0].mxu0
      %v1357 = vadd.f32 0.0, %v1356
      %v1358 = vpop.f32.mrb[0].mxu0
      %v1359 = vpop.f32.mrb[0].mxu0
      %v1360 = vadd.f32 0.0, %v1359
      %v1361 = vpop.f32.mrb[0].mxu0
      %1362 = vmatprep.mubr.bf16.mxu0 0
      %1363 = vmatmul.mubr.bf16.gmra.mrb[0].mxu0 %v1276
      %v1364 = vpop.f32.mrb[0].mxu0
      %v1365 = vadd.f32 0.0, %v1364
      %v1366 = vpop.f32.mrb[0].mxu0
      %v1367 = vpop.f32.mrb[0].mxu0
      %v1368 = vadd.f32 0.0, %v1367
      %v1369 = vpop.f32.mrb[0].mxu0
      %1370 = vmatprep.mubr.bf16.mxu0 0
      %1371 = vmatmul.mubr.bf16.gmra.mrb[0].mxu0 %v1278
      %v1372 = vpop.f32.mrb[0].mxu0
      %v1373 = vadd.f32 0.0, %v1372
      %v1374 = vpop.f32.mrb[0].mxu0
      %v1375 = vpop.f32.mrb[0].mxu0
      %v1376 = vadd.f32 0.0, %v1375
      %v1377 = vpop.f32.mrb[0].mxu0
      %1378 = vmatprep.mubr.bf16.mxu0 0
      %1379 = vmatmul.mubr.bf16.gmra.mrb[0].mxu0 %v1280
      %v1380 = vpop.f32.mrb[0].mxu0
      %v1381 = vadd.f32 0.0, %v1380
      %v1382 = vpop.f32.mrb[0].mxu0
      %v1383 = vpop.f32.mrb[0].mxu0
      %v1384 = vadd.f32 0.0, %v1383
      %v1385 = vpop.f32.mrb[0].mxu0
      %1386 = vmatprep.mubr.bf16.mxu0 0
      %1387 = vmatmul.mubr.bf16.gmra.mrb[0].mxu0 %v1282
      %v1388 = vpop.f32.mrb[0].mxu0
      %v1389 = vadd.f32 0.0, %v1388
      %v1390 = vpop.f32.mrb[0].mxu0
      %v1391 = vpop.f32.mrb[0].mxu0
      %v1392 = vadd.f32 0.0, %v1391
      %v1393 = vpop.f32.mrb[0].mxu0
      %1394 = vmatprep.mubr.bf16.mxu0 0
      %1395 = vmatmul.mubr.bf16.gmra.mrb[0].mxu0 %v1284
      %v1396 = vpop.f32.mrb[0].mxu0
      %v1397 = vadd.f32 0.0, %v1396
      %v1398 = vpop.f32.mrb[0].mxu0
      %v1399 = vpop.f32.mrb[0].mxu0
      %v1400 = vadd.f32 0.0, %v1399
      %v1401 = vpop.f32.mrb[0].mxu0
      %1402 = vmatprep.mubr.bf16.mxu0 0
      %1403 = vmatmul.mubr.bf16.gmra.mrb[0].mxu0 %v1286
      %v1404 = vpop.f32.mrb[0].mxu0
      %v1405 = vadd.f32 0.0, %v1404
      %v1406 = vpop.f32.mrb[0].mxu0
      %v1407 = vpop.f32.mrb[0].mxu0
      %v1408 = vadd.f32 0.0, %v1407
      %v1409 = vpop.f32.mrb[0].mxu0
      %1410 = vmatprep.mubr.bf16.mxu0 0
      %1411 = vmatmul.mubr.bf16.gmra.mrb[0].mxu0 %v1288
      %v1412 = vpop.f32.mrb[0].mxu0
      %v1413 = vadd.f32 0.0, %v1412
      %v1414 = vpop.f32.mrb[0].mxu0
      %v1415 = vpop.f32.mrb[0].mxu0
      %v1416 = vadd.f32 0.0, %v1415
      %v1417 = vpop.f32.mrb[0].mxu0
      %1418 = vmatprep.mubr.bf16.mxu0 0
      %1419 = vmatmul.mubr.bf16.gmra.mrb[0].mxu0 %v1290
      %v1420 = vpop.f32.mrb[0].mxu0
      %v1421 = vadd.f32 0.0, %v1420
      %v1422 = vpop.f32.mrb[0].mxu0
      %v1423 = vpop.f32.mrb[0].mxu0
      %v1424 = vadd.f32 0.0, %v1423
      %v1425 = vpop.f32.mrb[0].mxu0
      %1426 = vmatprep.mubr.bf16.mxu0 0
      %1427 = vmatmul.mubr.bf16.gmra.mrb[0].mxu0 %v1292
      %v1428 = vpop.f32.mrb[0].mxu0
      %v1429 = vadd.f32 0.0, %v1428
      %v1430 = vpop.f32.mrb[0].mxu0
      %v1431 = vpop.f32.mrb[0].mxu0
      %v1432 = vadd.f32 0.0, %v1431
      %v1433 = vpop.f32.mrb[0].mxu0
      %1434 = vmatprep.mubr.bf16.mxu0 0
      %1435 = vmatmul.mubr.bf16.gmra.mrb[0].mxu0 %v1294
      %v1436 = vpop.f32.mrb[0].mxu0
      %v1437 = vadd.f32 0.0, %v1436
      %v1438 = vpop.f32.mrb[0].mxu0
      %v1439 = vpop.f32.mrb[0].mxu0
      %v1440 = vadd.f32 0.0, %v1439
      %v1441 = vpop.f32.mrb[0].mxu0
      %1442 = vmatprep.mubr.bf16.mxu0 0
      %1443 = vmatmul.mubr.bf16.gmra.mrb[0].mxu0 %v1296
      %v1444 = vpop.f32.mrb[0].mxu0
      %v1445 = vadd.f32 0.0, %v1444
      %v1446 = vpop.f32.mrb[0].mxu0
      %v1447 = vpop.f32.mrb[0].mxu0
      %v1448 = vadd.f32 0.0, %v1447
      %v1449 = vpop.f32.mrb[0].mxu0
      %1450 = vmatprep.mubr.bf16.mxu0 0
      %1451 = vmatmul.mubr.bf16.gmra.mrb[0].mxu0 %v1298
      %v1452 = vpop.f32.mrb[0].mxu0
      %v1453 = vadd.f32 0.0, %v1452
      %v1454 = vpop.f32.mrb[0].mxu0
      %v1455 = vpop.f32.mrb[0].mxu0
      %v1456 = vadd.f32 0.0, %v1455
      %v1457 = vpop.f32.mrb[0].mxu0
      %1458 = vmatprep.mubr.bf16.mxu0 0
      %1459 = vmatmul.mubr.bf16.gmra.mrb[0].mxu0 %v1300
      %v1460 = vpop.f32.mrb[0].mxu0
      %v1461 = vadd.f32 0.0, %v1460
      %v1462 = vpop.f32.mrb[0].mxu0
      %v1463 = vpop.f32.mrb[0].mxu0
      %v1464 = vadd.f32 0.0, %v1463
      %v1465 = vpop.f32.mrb[0].mxu0
      %1466 = vdwg.mxu0
      %v1467 = vsel %vm1018, %v1341, 0.0
      %v1468 = vsel %vm1018, %v1344, 0.0
      %v1469 = vadd.f32 %v1467, %v1468
      %v1470 = vsel %vm1018, %v1349, 0.0
      %v1471 = vadd.f32 %v1469, %v1470
      %v1472 = vsel %vm1018, %v1352, 0.0
      %v1473 = vadd.f32 %v1471, %v1472
      %v1474 = vsel %vm1018, %v1357, 0.0
      %v1475 = vadd.f32 %v1473, %v1474
      %v1476 = vsel %vm1018, %v1360, 0.0
      %v1477 = vadd.f32 %v1475, %v1476
      %v1478 = vsel %vm1018, %v1365, 0.0
      %v1479 = vadd.f32 %v1477, %v1478
      %v1480 = vsel %vm1018, %v1368, 0.0
      %v1481 = vadd.f32 %v1479, %v1480
      %v1482 = vsel %vm1018, %v1373, 0.0
      %v1483 = vadd.f32 %v1481, %v1482
      %v1484 = vsel %vm1018, %v1376, 0.0
      %v1485 = vadd.f32 %v1483, %v1484
      %v1486 = vsel %vm1018, %v1381, 0.0
      %v1487 = vadd.f32 %v1485, %v1486
      %v1488 = vsel %vm1018, %v1384, 0.0
      %v1489 = vadd.f32 %v1487, %v1488
      %v1490 = vsel %vm1018, %v1389, 0.0
      %v1491 = vadd.f32 %v1489, %v1490
      %v1492 = vsel %vm1018, %v1392, 0.0
      %v1493 = vadd.f32 %v1491, %v1492
      %v1494 = vsel %vm1018, %v1397, 0.0
      %v1495 = vadd.f32 %v1493, %v1494
      %v1496 = vsel %vm1018, %v1400, 0.0
      %v1497 = vadd.f32 %v1495, %v1496
      %v1498 = vsel %vm1018, %v1405, 0.0
      %v1499 = vadd.f32 %v1497, %v1498
      %v1500 = vsel %vm1018, %v1408, 0.0
      %v1501 = vadd.f32 %v1499, %v1500
      %v1502 = vsel %vm1018, %v1413, 0.0
      %v1503 = vadd.f32 %v1501, %v1502
      %v1504 = vsel %vm1018, %v1416, 0.0
      %v1505 = vadd.f32 %v1503, %v1504
      %v1506 = vsel %vm1018, %v1421, 0.0
      %v1507 = vadd.f32 %v1505, %v1506
      %v1508 = vsel %vm1018, %v1424, 0.0
      %v1509 = vadd.f32 %v1507, %v1508
      %v1510 = vsel %vm1018, %v1429, 0.0
      %v1511 = vadd.f32 %v1509, %v1510
      %v1512 = vsel %vm1018, %v1432, 0.0
      %v1513 = vadd.f32 %v1511, %v1512
      %v1514 = vsel %vm1018, %v1437, 0.0
      %v1515 = vadd.f32 %v1513, %v1514
      %v1516 = vsel %vm1018, %v1440, 0.0
      %v1517 = vadd.f32 %v1515, %v1516
      %v1518 = vsel %vm1018, %v1445, 0.0
      %v1519 = vadd.f32 %v1517, %v1518
      %v1520 = vsel %vm1018, %v1448, 0.0
      %v1521 = vadd.f32 %v1519, %v1520
      %v1522 = vsel %vm1018, %v1453, 0.0
      %v1523 = vadd.f32 %v1521, %v1522
      %v1524 = vsel %vm1018, %v1456, 0.0
      %v1525 = vadd.f32 %v1523, %v1524
      %v1526 = vsel %vm1018, %v1461, 0.0
      %v1527 = vadd.f32 %v1525, %v1526
      %v1528 = vsel %vm1018, %v1464, 0.0
      %v1529 = vadd.f32 %v1527, %v1528
      %v1530 = vrot.slane %v1529, 4
      %v1531 = vadd.f32 %v1529, %v1530
      %v1532 = vrot.slane %v1531, 2
      %v1533 = vadd.f32 %v1531, %v1532
      %v1534 = vrot.slane %v1533, 1
      %v1535 = vadd.f32 %v1533, %v1534
      %vm1536 = vcmask 57344
      %1537 = vst.msk [vmem:[%s247] sm:$0x1] %vm1536, %v1535
      %v1538 = vmul.f32 %v1341, %v1341
      %v1539 = vmul.f32 %v1344, %v1344
      %v1540 = vmul.f32 %v1349, %v1349
      %v1541 = vmul.f32 %v1352, %v1352
      %v1542 = vmul.f32 %v1357, %v1357
      %v1543 = vmul.f32 %v1360, %v1360
      %v1544 = vmul.f32 %v1365, %v1365
      %v1545 = vmul.f32 %v1368, %v1368
      %v1546 = vmul.f32 %v1373, %v1373
      %v1547 = vmul.f32 %v1376, %v1376
      %v1548 = vmul.f32 %v1381, %v1381
      %v1549 = vmul.f32 %v1384, %v1384
      %v1550 = vmul.f32 %v1389, %v1389
      %v1551 = vmul.f32 %v1392, %v1392
      %v1552 = vmul.f32 %v1397, %v1397
      %v1553 = vmul.f32 %v1400, %v1400
      %v1554 = vmul.f32 %v1405, %v1405
      %v1555 = vmul.f32 %v1408, %v1408
      %v1556 = vmul.f32 %v1413, %v1413
      %v1557 = vmul.f32 %v1416, %v1416
      %v1558 = vmul.f32 %v1421, %v1421
      %v1559 = vmul.f32 %v1424, %v1424
      %v1560 = vmul.f32 %v1429, %v1429
      %v1561 = vmul.f32 %v1432, %v1432
      %v1562 = vmul.f32 %v1437, %v1437
      %v1563 = vmul.f32 %v1440, %v1440
      %v1564 = vmul.f32 %v1445, %v1445
      %v1565 = vmul.f32 %v1448, %v1448
      %v1566 = vmul.f32 %v1453, %v1453
      %v1567 = vmul.f32 %v1456, %v1456
      %v1568 = vmul.f32 %v1461, %v1461
      %v1569 = vmul.f32 %v1464, %v1464
      %v1570 = vsel %vm1018, %v1538, 0.0
      %v1571 = vsel %vm1018, %v1539, 0.0
      %v1572 = vadd.f32 %v1570, %v1571
      %v1573 = vsel %vm1018, %v1540, 0.0
      %v1574 = vadd.f32 %v1572, %v1573
      %v1575 = vsel %vm1018, %v1541, 0.0
      %v1576 = vadd.f32 %v1574, %v1575
      %v1577 = vsel %vm1018, %v1542, 0.0
      %v1578 = vadd.f32 %v1576, %v1577
      %v1579 = vsel %vm1018, %v1543, 0.0
      %v1580 = vadd.f32 %v1578, %v1579
      %v1581 = vsel %vm1018, %v1544, 0.0
      %v1582 = vadd.f32 %v1580, %v1581
      %v1583 = vsel %vm1018, %v1545, 0.0
      %v1584 = vadd.f32 %v1582, %v1583
      %v1585 = vsel %vm1018, %v1546, 0.0
      %v1586 = vadd.f32 %v1584, %v1585
      %v1587 = vsel %vm1018, %v1547, 0.0
      %v1588 = vadd.f32 %v1586, %v1587
      %v1589 = vsel %vm1018, %v1548, 0.0
      %v1590 = vadd.f32 %v1588, %v1589
      %v1591 = vsel %vm1018, %v1549, 0.0
      %v1592 = vadd.f32 %v1590, %v1591
      %v1593 = vsel %vm1018, %v1550, 0.0
      %v1594 = vadd.f32 %v1592, %v1593
      %v1595 = vsel %vm1018, %v1551, 0.0
      %v1596 = vadd.f32 %v1594, %v1595
      %v1597 = vsel %vm1018, %v1552, 0.0
      %v1598 = vadd.f32 %v1596, %v1597
      %v1599 = vsel %vm1018, %v1553, 0.0
      %v1600 = vadd.f32 %v1598, %v1599
      %v1601 = vsel %vm1018, %v1554, 0.0
      %v1602 = vadd.f32 %v1600, %v1601
      %v1603 = vsel %vm1018, %v1555, 0.0
      %v1604 = vadd.f32 %v1602, %v1603
      %v1605 = vsel %vm1018, %v1556, 0.0
      %v1606 = vadd.f32 %v1604, %v1605
      %v1607 = vsel %vm1018, %v1557, 0.0
      %v1608 = vadd.f32 %v1606, %v1607
      %v1609 = vsel %vm1018, %v1558, 0.0
      %v1610 = vadd.f32 %v1608, %v1609
      %v1611 = vsel %vm1018, %v1559, 0.0
      %v1612 = vadd.f32 %v1610, %v1611
      %v1613 = vsel %vm1018, %v1560, 0.0
      %v1614 = vadd.f32 %v1612, %v1613
      %v1615 = vsel %vm1018, %v1561, 0.0
      %v1616 = vadd.f32 %v1614, %v1615
      %v1617 = vsel %vm1018, %v1562, 0.0
      %v1618 = vadd.f32 %v1616, %v1617
      %v1619 = vsel %vm1018, %v1563, 0.0
      %v1620 = vadd.f32 %v1618, %v1619
      %v1621 = vsel %vm1018, %v1564, 0.0
      %v1622 = vadd.f32 %v1620, %v1621
      %v1623 = vsel %vm1018, %v1565, 0.0
      %v1624 = vadd.f32 %v1622, %v1623
      %v1625 = vsel %vm1018, %v1566, 0.0
      %v1626 = vadd.f32 %v1624, %v1625
      %v1627 = vsel %vm1018, %v1567, 0.0
      %v1628 = vadd.f32 %v1626, %v1627
      %v1629 = vsel %vm1018, %v1568, 0.0
      %v1630 = vadd.f32 %v1628, %v1629
      %v1631 = vsel %vm1018, %v1569, 0.0
      %v1632 = vadd.f32 %v1630, %v1631
      %v1633 = vrot.slane %v1632, 4
      %v1634 = vadd.f32 %v1632, %v1633
      %v1635 = vrot.slane %v1634, 2
      %v1636 = vadd.f32 %v1634, %v1635
      %v1637 = vrot.slane %v1636, 1
      %v1638 = vadd.f32 %v1636, %v1637
      %1639 = vst.msk [vmem:[%s253] sm:$0x1] %vm1536, %v1638
      %v1640 = vpack.c.bf16 %v1344, %v1341
      %v1641 = vpack.c.bf16 %v1352, %v1349
      %v1642 = vpack.c.bf16 %v1360, %v1357
      %v1643 = vpack.c.bf16 %v1368, %v1365
      %v1644 = vpack.c.bf16 %v1376, %v1373
      %v1645 = vpack.c.bf16 %v1384, %v1381
      %v1646 = vpack.c.bf16 %v1392, %v1389
      %v1647 = vpack.c.bf16 %v1400, %v1397
      %v1648 = vpack.c.bf16 %v1408, %v1405
      %v1649 = vpack.c.bf16 %v1416, %v1413
      %v1650 = vpack.c.bf16 %v1424, %v1421
      %v1651 = vpack.c.bf16 %v1432, %v1429
      %v1652 = vpack.c.bf16 %v1440, %v1437
      %v1653 = vpack.c.bf16 %v1448, %v1445
      %v1654 = vpack.c.bf16 %v1456, %v1453
      %v1655 = vpack.c.bf16 %v1464, %v1461
      %v1672 = vunpack.c.l.b16 %v1640
      %v1673 = vunpack.c.h.b16 %v1640
      %v1674 = vunpack.c.l.b16 %v1641
      %v1675 = vunpack.c.h.b16 %v1641
      %v1676 = vunpack.c.l.b16 %v1642
      %v1677 = vunpack.c.h.b16 %v1642
      %v1678 = vunpack.c.l.b16 %v1643
      %v1679 = vunpack.c.h.b16 %v1643
      %v1680 = vunpack.c.l.b16 %v1644
      %v1681 = vunpack.c.h.b16 %v1644
      %v1682 = vunpack.c.l.b16 %v1645
      %v1683 = vunpack.c.h.b16 %v1645
      %v1684 = vunpack.c.l.b16 %v1646
      %v1685 = vunpack.c.h.b16 %v1646
      %v1686 = vunpack.c.l.b16 %v1647
      %v1687 = vunpack.c.h.b16 %v1647
      %v1688 = vunpack.c.l.b16 %v1648
      %v1689 = vunpack.c.h.b16 %v1648
      %v1690 = vunpack.c.l.b16 %v1649
      %v1691 = vunpack.c.h.b16 %v1649
      %v1692 = vunpack.c.l.b16 %v1650
      %v1693 = vunpack.c.h.b16 %v1650
      %v1694 = vunpack.c.l.b16 %v1651
      %v1695 = vunpack.c.h.b16 %v1651
      %v1696 = vunpack.c.l.b16 %v1652
      %v1697 = vunpack.c.h.b16 %v1652
      %v1698 = vunpack.c.l.b16 %v1653
      %v1699 = vunpack.c.h.b16 %v1653
      %v1700 = vunpack.c.l.b16 %v1654
      %v1701 = vunpack.c.h.b16 %v1654
      %v1702 = vunpack.c.l.b16 %v1655
      %v1703 = vunpack.c.h.b16 %v1655
      %v1704 = vpack.c.b16 %v1672, %v1672
      %v1705 = vpack.c.b16 %v1673, %v1673
      %v1706 = vpack.c.b16 %v1674, %v1674
      %v1707 = vpack.c.b16 %v1675, %v1675
      %v1708 = vpack.c.b16 %v1676, %v1676
      %v1709 = vpack.c.b16 %v1677, %v1677
      %v1710 = vpack.c.b16 %v1678, %v1678
      %v1711 = vpack.c.b16 %v1679, %v1679
      %v1712 = vpack.c.b16 %v1680, %v1680
      %v1713 = vpack.c.b16 %v1681, %v1681
      %v1714 = vpack.c.b16 %v1682, %v1682
      %v1715 = vpack.c.b16 %v1683, %v1683
      %v1716 = vpack.c.b16 %v1684, %v1684
      %v1717 = vpack.c.b16 %v1685, %v1685
      %v1718 = vpack.c.b16 %v1686, %v1686
      %v1719 = vpack.c.b16 %v1687, %v1687
      %v1720 = vpack.c.b16 %v1688, %v1688
      %v1721 = vpack.c.b16 %v1689, %v1689
      %v1722 = vpack.c.b16 %v1690, %v1690
      %v1723 = vpack.c.b16 %v1691, %v1691
      %v1724 = vpack.c.b16 %v1692, %v1692
      %v1725 = vpack.c.b16 %v1693, %v1693
      %v1726 = vpack.c.b16 %v1694, %v1694
      %v1727 = vpack.c.b16 %v1695, %v1695
      %v1728 = vpack.c.b16 %v1696, %v1696
      %v1729 = vpack.c.b16 %v1697, %v1697
      %v1730 = vpack.c.b16 %v1698, %v1698
      %v1731 = vpack.c.b16 %v1699, %v1699
      %v1732 = vpack.c.b16 %v1700, %v1700
      %v1733 = vpack.c.b16 %v1701, %v1701
      %v1734 = vpack.c.b16 %v1702, %v1702
      %v1735 = vpack.c.b16 %v1703, %v1703
      %vm1768 = vcmask 60416
      %1769 = vst.msk [vmem:[%s240] sm:$0xf] %vm1768, %v1704
      %1770 = vst.msk [vmem:[%s240 + $0x4] sm:$0xf] %vm1768, %v1705
      %1771 = vst.msk [vmem:[%s240 + $0x8] sm:$0xf] %vm1768, %v1706
      %1772 = vst.msk [vmem:[%s240 + $0xc] sm:$0xf] %vm1768, %v1707
      %1773 = vst.msk [vmem:[%s240 + $0x10] sm:$0xf] %vm1768, %v1708
      %1774 = vst.msk [vmem:[%s240 + $0x14] sm:$0xf] %vm1768, %v1709
      %1775 = vst.msk [vmem:[%s240 + $0x18] sm:$0xf] %vm1768, %v1710
      %1776 = vst.msk [vmem:[%s240 + $0x1c] sm:$0xf] %vm1768, %v1711
      %1777 = vst.msk [vmem:[%s240 + $0x20] sm:$0xf] %vm1768, %v1712
      %1778 = vst.msk [vmem:[%s240 + $0x24] sm:$0xf] %vm1768, %v1713
      %1779 = vst.msk [vmem:[%s240 + $0x28] sm:$0xf] %vm1768, %v1714
      %1780 = vst.msk [vmem:[%s240 + $0x2c] sm:$0xf] %vm1768, %v1715
      %1781 = vst.msk [vmem:[%s240 + $0x30] sm:$0xf] %vm1768, %v1716
      %1782 = vst.msk [vmem:[%s240 + $0x34] sm:$0xf] %vm1768, %v1717
      %1783 = vst.msk [vmem:[%s240 + $0x38] sm:$0xf] %vm1768, %v1718
      %1784 = vst.msk [vmem:[%s240 + $0x3c] sm:$0xf] %vm1768, %v1719
      %1785 = vst.msk [vmem:[%s240 + $0x40] sm:$0xf] %vm1768, %v1720
      %1786 = vst.msk [vmem:[%s240 + $0x44] sm:$0xf] %vm1768, %v1721
      %1787 = vst.msk [vmem:[%s240 + $0x48] sm:$0xf] %vm1768, %v1722
      %1788 = vst.msk [vmem:[%s240 + $0x4c] sm:$0xf] %vm1768, %v1723
      %1789 = vst.msk [vmem:[%s240 + $0x50] sm:$0xf] %vm1768, %v1724
      %1790 = vst.msk [vmem:[%s240 + $0x54] sm:$0xf] %vm1768, %v1725
      %1791 = vst.msk [vmem:[%s240 + $0x58] sm:$0xf] %vm1768, %v1726
      %1792 = vst.msk [vmem:[%s240 + $0x5c] sm:$0xf] %vm1768, %v1727
      %1793 = vst.msk [vmem:[%s240 + $0x60] sm:$0xf] %vm1768, %v1728
      %1794 = vst.msk [vmem:[%s240 + $0x64] sm:$0xf] %vm1768, %v1729
      %1795 = vst.msk [vmem:[%s240 + $0x68] sm:$0xf] %vm1768, %v1730
      %1796 = vst.msk [vmem:[%s240 + $0x6c] sm:$0xf] %vm1768, %v1731
      %1797 = vst.msk [vmem:[%s240 + $0x70] sm:$0xf] %vm1768, %v1732
      %1798 = vst.msk [vmem:[%s240 + $0x74] sm:$0xf] %vm1768, %v1733
      %1799 = vst.msk [vmem:[%s240 + $0x78] sm:$0xf] %vm1768, %v1734
      %1800 = vst.msk [vmem:[%s240 + $0x7c] sm:$0xf] %vm1768, %v1735
      %s1801 = smul.u32 32, %s21
      %p1802 = scmp.lt.s32.totalorder %s20, 1
      %s1803 = scalar_select %p1802, %s20, 1
      %p1804 = scmp.lt.s32.totalorder %s1801, 31
      %s1805 = scalar_select %p1804, %s1801, 31
      %s1806 = smul.addr %s1803, 32
      %s1807 = sadd.s32 %s1805, %s1806
      %s1808 = smul.addr %s1807, 4
      %s1809 = scalar_lea.vmem %s2, %s1808
      %p1810 = scmp.lt.s32.totalorder %s20, 1
      %s1811 = scalar_select %p1810, %s20, 1
      %p1812 = scmp.lt.s32.totalorder %s21, 0
      %s1813 = scalar_select %p1812, %s21, 0
      %s1814 = sadd.s32 %s1813, %s1811
      %s1815 = scalar_lea.vmem %s3, %s1814
      %p1816 = scmp.lt.s32.totalorder %s20, 1
      %s1817 = scalar_select %p1816, %s20, 1
      %p1818 = scmp.lt.s32.totalorder %s21, 0
      %s1819 = scalar_select %p1818, %s21, 0
      %s1820 = sadd.s32 %s1819, %s1817
      %s1821 = scalar_lea.vmem %s4, %s1820
      // Predicated region
      $region29: #{basic_conv.2} parent=27 // pred_check
        %p1822 = pneg %p95
      $region30: #{basic_conv.2} parent=27 // pred_check_branch
        %1824 = sbr.rel (%p1822) target = $region32
      $region31: #{basic_conv.2} parent=27 // pred_region
        %s1825 = smul.u32 32, %s21
      $region32: #{basic_conv.2} parent=27 // pred_fallthru
        _
      // Predicated region
      $region33: #{basic_conv.2} parent=27 // pred_check
        %p1826 = pneg %p123
      $region34: #{basic_conv.2} parent=27 // pred_check_branch
        %1828 = sbr.rel (%p1826) target = $region36
      $region35: #{basic_conv.2} parent=27 // pred_region
        _
      $region36: #{basic_conv.2} parent=27 // pred_fallthru
        _
      // Predicated region
      $region37: #{basic_conv.2} parent=27 // pred_check
        %p1829 = pneg %p151
      $region38: #{basic_conv.2} parent=27 // pred_check_branch
        %1831 = sbr.rel (%p1829) target = $region40
      $region39: #{basic_conv.2} parent=27 // pred_region
        _
      $region40: #{basic_conv.2} parent=27 // pred_fallthru
        _
    $region28: #{basic_conv.2} parent=5 // pred_fallthru
      _
    %p1832 = scmp.le.s32.totalorder 2, %s11
    // Predicated region
    $region41: #{basic_conv.2} parent=5 // pred_check
      %p1833 = pneg %p1832
    $region42: #{basic_conv.2} parent=5 // pred_check_branch
      %1835 = sbr.rel (%p1833) target = $region44
    $region43: #{basic_conv.2} parent=5 // pred_region
      %s1836 = ssub.s32 %s11, 2
      // Predicated region
      $region45: #{basic_conv.2} parent=43 // pred_check
        %p1837 = pneg %p101
      $region46: #{basic_conv.2} parent=43 // pred_check_branch
        %1839 = sbr.rel (%p1837) target = $region48
      $region47: #{basic_conv.2} parent=43 // pred_region
        %s1840 = smul.u32 32, %s23
        %p1841 = scmp.lt.s32.totalorder %s22, 1
        %s1842 = scalar_select %p1841, %s22, 1
        %p1843 = scmp.lt.s32.totalorder %s1840, 31
        %s1844 = scalar_select %p1843, %s1840, 31
        %s1845 = smul.addr %s1842, 32
        %s1846 = sadd.s32 %s1844, %s1845
        %s1847 = smul.addr %s1846, 4
        %s1848 = scalar_lea.vmem %s2, %s1847
      $region48: #{basic_conv.2} parent=43 // pred_fallthru
        _
      // Predicated region
      $region49: #{basic_conv.2} parent=43 // pred_check
        %p1849 = pneg %p129
      $region50: #{basic_conv.2} parent=43 // pred_check_branch
        %1851 = sbr.rel (%p1849) target = $region52
      $region51: #{basic_conv.2} parent=43 // pred_region
        %p1852 = scmp.lt.s32.totalorder %s22, 1
        %s1853 = scalar_select %p1852, %s22, 1
        %p1854 = scmp.lt.s32.totalorder %s23, 0
        %s1855 = scalar_select %p1854, %s23, 0
        %s1856 = sadd.s32 %s1855, %s1853
        %s1857 = scalar_lea.vmem %s3, %s1856
      $region52: #{basic_conv.2} parent=43 // pred_fallthru
        _
      // Predicated region
      $region53: #{basic_conv.2} parent=43 // pred_check
        %p1858 = pneg %p157
      $region54: #{basic_conv.2} parent=43 // pred_check_branch
        %1860 = sbr.rel (%p1858) target = $region56
      $region55: #{basic_conv.2} parent=43 // pred_region
        %p1861 = scmp.lt.s32.totalorder %s22, 1
        %s1862 = scalar_select %p1861, %s22, 1
        %p1863 = scmp.lt.s32.totalorder %s23, 0
        %s1864 = scalar_select %p1863, %s23, 0
        %s1865 = sadd.s32 %s1864, %s1862
        %s1866 = scalar_lea.vmem %s4, %s1865
      $region56: #{basic_conv.2} parent=43 // pred_fallthru
        _
    $region44: #{basic_conv.2} parent=5 // pred_fallthru
      _
  $region6: #{basic_conv.2} parent=0 // loop_footer
    %s15 = sadd.s32 1, %s11
  $region7: #{basic_conv.2} parent=0 // loop_footer_branch
    %10 = sbr.rel target = $region3
  $region8: #{basic_conv.2} parent=0 // loop_exit
    _

</llo_original>
